<compile_context>
chip_gen: v7x
topology: tpu7x:2x2x1
jax: 0.10.0
libtpu: 0.0.40
codegen_flags: <defaults>
</compile_context>

<pallas_src>
import functools
import math

import jax
import jax.numpy as jnp
from jax.experimental import pallas as pl
from jax.experimental.pallas import tpu as pltpu


# ----------------------------------------------------------------------------
# helpers
# ----------------------------------------------------------------------------
def _pick_tile(dim, target, aligns):
    """Largest divisor of `dim` that is <= target and a multiple of one of the
    preferred alignments (tried in order); falls back to the full dim."""
    if dim <= target:
        return dim
    for align in aligns:
        t = (target // align) * align
        while t >= align:
            if dim % t == 0:
                return t
            t -= align
    return dim


_VMEM_CAP = None


def _vmem_cap_bytes():
    global _VMEM_CAP
    if _VMEM_CAP is None:
        cap = None
        try:
            info = pltpu.get_tpu_info()
            cap = getattr(info, "vmem_capacity_bytes", None)
        except Exception:
            cap = None
        _VMEM_CAP = int(cap) if cap else 64 * 1024 * 1024   # conservative (v7x)
    return _VMEM_CAP


def _cp(dims, est_bytes):
    """CompilerParams with a generation-aware scoped-VMEM limit: 4x the block
    byte estimate, floored at 16 MiB, capped at half the physical VMEM
    (~64 MiB on v5e/v6e, ~32 MiB on v7x)."""
    limit = int(min(max(4 * est_bytes, 16 * 1024 * 1024), _vmem_cap_bytes() // 2))
    return pltpu.CompilerParams(dimension_semantics=dims, vmem_limit_bytes=limit)


def _apply_act(acc, activation):
    if activation == "relu":
        return jnp.maximum(acc, 0.0)
    if activation == "gelu":
        # TODO(synk): HF DistilBERT uses erf-gelu; tanh approximation used here.
        return jax.nn.gelu(acc, approximate=True)
    return acc


# ----------------------------------------------------------------------------
# Linear kernels (bf16 MXU operands, f32 accumulation)
# ----------------------------------------------------------------------------
def _linear_1k_kernel(x_ref, w_ref, b_ref, o_ref, *, activation):
    """Single-k-step o = act(x @ w + b): no scratch, no pl.when phases."""
    acc = jnp.dot(x_ref[...], w_ref[...], preferred_element_type=jnp.float32)
    acc = _apply_act(acc + b_ref[...].astype(jnp.float32), activation)
    o_ref[...] = acc.astype(o_ref.dtype)


def _linear_mk_kernel(x_ref, w_ref, b_ref, o_ref, acc_ref, *, activation):
    """K-tiled o = act(x @ w + b) with an f32 VMEM accumulator."""
    @pl.when(pl.program_id(2) == 0)
    def _():
        acc_ref[...] = jnp.zeros_like(acc_ref)

    acc_ref[...] += jnp.dot(x_ref[...], w_ref[...],
                            preferred_element_type=jnp.float32)

    @pl.when(pl.program_id(2) == pl.num_programs(2) - 1)
    def _():
        acc = _apply_act(acc_ref[...] + b_ref[...].astype(jnp.float32), activation)
        o_ref[...] = acc.astype(o_ref.dtype)


def linear(x, w, b=None, activation=None, out_dtype=jnp.bfloat16,
           tm_target=512, tn_target=768, tk_target=1024):
    m, k = x.shape
    n = w.shape[1]
    if b is None:
        b = jnp.zeros((n,), jnp.float32)
    b2 = b.reshape(1, n).astype(jnp.float32)
    xb = x.astype(jnp.bfloat16)
    wb = w.astype(jnp.bfloat16)

    tm = _pick_tile(m, tm_target, (16, 8))          # bf16 packs 16 rows / vreg
    tn = _pick_tile(n, tn_target, (256, 128))       # fill 256x256 MXU passes
    tk = _pick_tile(k, tk_target, (256, 128))
    out_bpe = jnp.dtype(out_dtype).itemsize

    if tk == k:
        est = (2 * (tm * k + k * tn) * 2 + 2 * tm * tn * out_bpe + 2 * tn * 4)
        return pl.pallas_call(
            functools.partial(_linear_1k_kernel, activation=activation),
            out_shape=jax.ShapeDtypeStruct((m, n), out_dtype),
            grid=(m // tm, n // tn),
            in_specs=[
                pl.BlockSpec((tm, k), lambda i, j: (i, 0)),
                pl.BlockSpec((k, tn), lambda i, j: (0, j)),
                pl.BlockSpec((1, tn), lambda i, j: (0, j)),
            ],
            out_specs=pl.BlockSpec((tm, tn), lambda i, j: (i, j)),
            compiler_params=_cp(("parallel", "parallel"), est),
        )(xb, wb, b2)

    # TODO(synk): on v5e, if profiling shows exposed DMA on the weight stream,
    # add pipeline_mode=pl.Buffered(3) to the weight BlockSpec.
    est = (2 * (tm * tk + tk * tn) * 2 + 2 * tm * tn * out_bpe
           + tm * tn * 4 + 2 * tn * 4)
    return pl.pallas_call(
        functools.partial(_linear_mk_kernel, activation=activation),
        out_shape=jax.ShapeDtypeStruct((m, n), out_dtype),
        grid=(m // tm, n // tn, k // tk),
        in_specs=[
            pl.BlockSpec((tm, tk), lambda i, j, kk: (i, kk)),
            pl.BlockSpec((tk, tn), lambda i, j, kk: (kk, j)),
            pl.BlockSpec((1, tn), lambda i, j, kk: (0, j)),
        ],
        out_specs=pl.BlockSpec((tm, tn), lambda i, j, kk: (i, j)),
        scratch_shapes=[pltpu.VMEM((tm, tn), jnp.float32)],
        compiler_params=_cp(("parallel", "parallel", "arbitrary"), est),
    )(xb, wb, b2)


# ----------------------------------------------------------------------------
# Linear fused with residual add + LayerNorm (wo / w2 writebacks)
# ----------------------------------------------------------------------------
def _ln_rows(y, g, b, eps):
    mu = jnp.mean(y, axis=-1, keepdims=True)
    var = jnp.mean((y - mu) ** 2, axis=-1, keepdims=True)
    return (y - mu) * jax.lax.rsqrt(var + eps) * g + b


def _linear_add_ln_1k_kernel(x_ref, w_ref, b_ref, r_ref, g_ref, be_ref, o_ref,
                             *, eps):
    y = jnp.dot(x_ref[...], w_ref[...], preferred_element_type=jnp.float32)
    y = y + b_ref[...].astype(jnp.float32) + r_ref[...].astype(jnp.float32)
    o_ref[...] = _ln_rows(y, g_ref[...], be_ref[...], eps).astype(o_ref.dtype)


def _linear_add_ln_mk_kernel(x_ref, w_ref, b_ref, r_ref, g_ref, be_ref, o_ref,
                             acc_ref, *, eps):
    @pl.when(pl.program_id(1) == 0)
    def _():
        acc_ref[...] = jnp.zeros_like(acc_ref)

    acc_ref[...] += jnp.dot(x_ref[...], w_ref[...],
                            preferred_element_type=jnp.float32)

    @pl.when(pl.program_id(1) == pl.num_programs(1) - 1)
    def _():
        y = (acc_ref[...] + b_ref[...].astype(jnp.float32)
             + r_ref[...].astype(jnp.float32))
        o_ref[...] = _ln_rows(y, g_ref[...], be_ref[...], eps).astype(o_ref.dtype)


def linear_add_ln(x, w, b, residual, gamma, beta, eps=1e-12,
                  out_dtype=jnp.bfloat16, tm_target=512, tk_target=1024):
    """o = LayerNorm(x @ w + b + residual); full-N tiles so the LN reduction
    is resident at writeback."""
    m, k = x.shape
    n = w.shape[1]
    tm = _pick_tile(m, tm_target, (16, 8))
    tk = _pick_tile(k, tk_target, (256, 128))
    b2 = b.reshape(1, n).astype(jnp.float32)
    g2 = gamma.reshape(1, n).astype(jnp.float32)
    be2 = beta.reshape(1, n).astype(jnp.float32)
    xb = x.astype(jnp.bfloat16)
    wb = w.astype(jnp.bfloat16)
    out_bpe = jnp.dtype(out_dtype).itemsize

    if tk == k:
        est = (2 * (tm * k + k * n) * 2 + 2 * tm * n * out_bpe
               + 2 * tm * n * 2 + 6 * n * 4 + tm * n * 4)
        return pl.pallas_call(
            functools.partial(_linear_add_ln_1k_kernel, eps=eps),
            out_shape=jax.ShapeDtypeStruct((m, n), out_dtype),
            grid=(m // tm,),
            in_specs=[
                pl.BlockSpec((tm, k), lambda i: (i, 0)),
                pl.BlockSpec((k, n), lambda i: (0, 0)),
                pl.BlockSpec((1, n), lambda i: (0, 0)),
                pl.BlockSpec((tm, n), lambda i: (i, 0)),
                pl.BlockSpec((1, n), lambda i: (0, 0)),
                pl.BlockSpec((1, n), lambda i: (0, 0)),
            ],
            out_specs=pl.BlockSpec((tm, n), lambda i: (i, 0)),
            compiler_params=_cp(("parallel",), est),
        )(xb, wb, b2, residual, g2, be2)

    est = (2 * (tm * tk + tk * n) * 2 + 2 * tm * n * out_bpe
           + 2 * tm * n * 2 + 6 * n * 4 + tm * n * 4 + tm * n * 4)
    return pl.pallas_call(
        functools.partial(_linear_add_ln_mk_kernel, eps=eps),
        out_shape=jax.ShapeDtypeStruct((m, n), out_dtype),
        grid=(m // tm, k // tk),
        in_specs=[
            pl.BlockSpec((tm, tk), lambda i, kk: (i, kk)),
            pl.BlockSpec((tk, n), lambda i, kk: (kk, 0)),
            pl.BlockSpec((1, n), lambda i, kk: (0, 0)),
            pl.BlockSpec((tm, n), lambda i, kk: (i, 0)),
            pl.BlockSpec((1, n), lambda i, kk: (0, 0)),
            pl.BlockSpec((1, n), lambda i, kk: (0, 0)),
        ],
        out_specs=pl.BlockSpec((tm, n), lambda i, kk: (i, 0)),
        scratch_shapes=[pltpu.VMEM((tm, n), jnp.float32)],
        compiler_params=_cp(("parallel", "arbitrary"), est),
    )(xb, wb, b2, residual, g2, be2)


# ----------------------------------------------------------------------------
# Embedding LayerNorm (word + broadcast positional, fused add + LN)
# ----------------------------------------------------------------------------
def _add_ln_kernel(x_ref, r_ref, g_ref, b_ref, o_ref, *, eps):
    x = x_ref[...].astype(jnp.float32) + r_ref[...].astype(jnp.float32)
    o_ref[...] = _ln_rows(x, g_ref[...], b_ref[...], eps).astype(o_ref.dtype)


def embed_layernorm(word, pos, gamma, beta, batch, seq, eps=1e-12,
                    out_dtype=jnp.bfloat16):
    """LayerNorm(word + pos) with the per-batch positional broadcast done via
    the index_map (no jnp.tile / separate add materialized in HBM)."""
    m, d = word.shape
    est = 8 * seq * d * 4
    return pl.pallas_call(
        functools.partial(_add_ln_kernel, eps=eps),
        out_shape=jax.ShapeDtypeStruct((m, d), out_dtype),
        grid=(batch,),
        in_specs=[
            pl.BlockSpec((seq, d), lambda b: (b, 0)),
            pl.BlockSpec((seq, d), lambda b: (0, 0)),   # same pos block each batch
            pl.BlockSpec((1, d), lambda b: (0, 0)),
            pl.BlockSpec((1, d), lambda b: (0, 0)),
        ],
        out_specs=pl.BlockSpec((seq, d), lambda b: (b, 0)),
        compiler_params=_cp(("parallel",), est),
    )(word, pos, gamma.reshape(1, d).astype(jnp.float32),
      beta.reshape(1, d).astype(jnp.float32))


# ----------------------------------------------------------------------------
# Multi-head attention
# ----------------------------------------------------------------------------
def _attn_heads(q_all, k_all, v_all, mask_row, o_ref, *, n_heads, scale):
    """Softmax(q k^T) v per head; each head's context is stored directly into
    its column slice of the output block (no concatenate)."""
    hd = q_all.shape[1]
    dh = hd // n_heads
    for h in range(n_heads):
        sl = slice(h * dh, (h + 1) * dh)
        q = q_all[:, sl]
        k = k_all[:, sl]
        v = v_all[:, sl]
        s = jax.lax.dot_general(q, k, (((1,), (1,)), ((), ())),
                                preferred_element_type=jnp.float32) * scale
        s = jnp.where(mask_row > 0, s, jnp.float32(-1e9))
        s = s - jnp.max(s, axis=-1, keepdims=True)
        p = jnp.exp(s)
        p = p * pl.reciprocal(jnp.sum(p, axis=-1, keepdims=True), approx=True)
        ctx = jnp.dot(p.astype(v.dtype), v, preferred_element_type=jnp.float32)
        o_ref[:, sl] = ctx.astype(o_ref.dtype)


def _attn_group_kernel(q_ref, k_ref, v_ref, m_ref, o_ref, *, heads, scale):
    """One 128-lane-aligned head group of one batch element per grid step."""
    _attn_heads(q_ref[...], k_ref[...], v_ref[...], m_ref[0], o_ref,
                n_heads=heads, scale=scale)


def _attn_full_kernel(qkv_ref, m_ref, o_ref, *, n_heads, scale):
    """Fallback: all heads of one batch element, full (S, 3D) QKV slab."""
    d = qkv_ref.shape[1] // 3
    qkv = qkv_ref[...]
    _attn_heads(qkv[:, :d], qkv[:, d:2 * d], qkv[:, 2 * d:], m_ref[0], o_ref,
                n_heads=n_heads, scale=scale)


def mha_attention(qkv, mask3, *, n_heads, scale, batch, seq):
    # TODO(synk): at very long sequence lengths this per-(batch, head-group)
    # block would be replaced by a flash-style key-tiled online-softmax kernel.
    bs, three_d = qkv.shape
    d = three_d // 3
    dh = d // n_heads

    # Smallest head group whose lane width is a multiple of 128 (gh=2 for
    # DistilBERT dh=64): keeps per-step VMEM ~ gh/H of the full slab and makes
    # every Q/K/V fetch and the output store lane-dense.
    gh = None
    for g in range(1, n_heads + 1):
        if n_heads % g == 0 and (g * dh) % 128 == 0:
            gh = g
            break

    if gh is None:
        # Tiny / non-alignable head dim (e.g. the unit-test config): one batch
        # element per step, slice q/k/v from the full slab in-kernel.
        est = (2 * seq * three_d * 2 + 2 * seq * d * 2 + 2 * seq * 4
               + 4 * seq * seq * 4 + seq * d * 4)
        return pl.pallas_call(
            functools.partial(_attn_full_kernel, n_heads=n_heads, scale=scale),
            out_shape=jax.ShapeDtypeStruct((bs, d), qkv.dtype),
            grid=(batch,),
            in_specs=[
                pl.BlockSpec((seq, three_d), lambda b: (b, 0)),
                pl.BlockSpec((1, 1, seq), lambda b: (b, 0, 0)),
            ],
            out_specs=pl.BlockSpec((seq, d), lambda b: (b, 0)),
            compiler_params=_cp(("parallel",), est),
        )(qkv, mask3)

    gw = gh * dh
    n_groups = n_heads // gh
    kcol = d // gw          # block-column offset of K inside the fused QKV slab
    vcol = 2 * d // gw      # block-column offset of V
    est = (3 * 2 * seq * gw * 2 + 2 * seq * gw * 2 + 2 * seq * 4
           + 4 * seq * seq * 4 + seq * gw * 4)
    return pl.pallas_call(
        functools.partial(_attn_group_kernel, heads=gh, scale=scale),
        out_shape=jax.ShapeDtypeStruct((bs, d), qkv.dtype),
        grid=(batch, n_groups),
        in_specs=[
            pl.BlockSpec((seq, gw), lambda b, g: (b, g)),           # Q group
            pl.BlockSpec((seq, gw), lambda b, g: (b, kcol + g)),    # K group
            pl.BlockSpec((seq, gw), lambda b, g: (b, vcol + g)),    # V group
            pl.BlockSpec((1, 1, seq), lambda b, g: (b, 0, 0)),
        ],
        out_specs=pl.BlockSpec((seq, gw), lambda b, g: (b, g)),
        compiler_params=_cp(("parallel", "parallel"), est),
    )(qkv, qkv, qkv, mask3)


# ----------------------------------------------------------------------------
# Deterministic parameter init (synthetic DistilBERT-shaped transformer)
# ----------------------------------------------------------------------------
def init_params(key, cfg):
    D, V, T = cfg["dim"], cfg["source_vocab"], cfg["token_dim"]
    F, L = cfg["ffn"], cfg["n_layers"]
    keys = iter(jax.random.split(key, 8 + 8 * L))

    def nrm(shape, scale=0.02, dtype=jnp.bfloat16):
        return (jax.random.normal(next(keys), shape, jnp.float32) * scale).astype(dtype)

    params = {
        # Mapped_Embedding_Layer: frozen source embeddings + rand() coefficients
        "source_emb": nrm((V, D)),
        "mapped_coef": jax.random.uniform(next(keys), (T, V),
                                          jnp.float32).astype(jnp.bfloat16),
        "pos_emb": nrm((cfg["max_pos"], D), dtype=jnp.float32),
        "emb_ln_g": jnp.ones((D,), jnp.float32),
        "emb_ln_b": jnp.zeros((D,), jnp.float32),
        "pre_w": nrm((D, D)), "pre_b": jnp.zeros((D,), jnp.float32),
        "cls_w": nrm((D, cfg["num_labels"])),
        "cls_b": jnp.zeros((cfg["num_labels"],), jnp.float32),
        "layers": [],
    }
    for _ in range(L):
        wq, wk, wv = nrm((D, D)), nrm((D, D)), nrm((D, D))
        params["layers"].append({
            "wqkv": jnp.concatenate([wq, wk, wv], axis=1),   # fused (D, 3D)
            "bqkv": jnp.zeros((3 * D,), jnp.float32),
            "wo": nrm((D, D)), "bo": jnp.zeros((D,), jnp.float32),
            "ln1_g": jnp.ones((D,), jnp.float32), "ln1_b": jnp.zeros((D,), jnp.float32),
            "w1": nrm((D, F)), "b1": jnp.zeros((F,), jnp.float32),
            "w2": nrm((F, D)), "b2": jnp.zeros((D,), jnp.float32),
            "ln2_g": jnp.ones((D,), jnp.float32), "ln2_b": jnp.zeros((D,), jnp.float32),
        })
    return params


# ----------------------------------------------------------------------------
# R2DL forward pass
# ----------------------------------------------------------------------------
def r2dl_forward(params, cfg, input_ids, attention_mask):
    B, S = input_ids.shape
    D, H = cfg["dim"], cfg["n_heads"]
    scale = 1.0 / math.sqrt(D // H)

    # Mapped_Embedding_Layer: target_embeddings = M @ VS.  This (21 x V x D)
    # matmul is >99% MXU padding as a dedicated pallas_call, so it (and the
    # data-dependent row gather) stays in XLA glue.
    # TODO(synk): the row gather could be folded into embed_layernorm via
    # scalar-prefetched input_ids with the tiny (T, D) table resident in VMEM.
    target_emb = jnp.dot(params["mapped_coef"].astype(jnp.float32),
                         params["source_emb"].astype(jnp.float32))       # (T, D)
    word = jnp.take(target_emb, input_ids.reshape(-1),
                    axis=0).astype(jnp.bfloat16)                         # (B*S, D)

    pos = params["pos_emb"][:S]                                          # (S, D)
    x = embed_layernorm(word, pos, params["emb_ln_g"], params["emb_ln_b"], B, S)

    mask3 = attention_mask.reshape(B, 1, S).astype(jnp.float32)

    for layer in params["layers"]:
        qkv = linear(x, layer["wqkv"], layer["bqkv"])                    # (B*S, 3D)
        ctx = mha_attention(qkv, mask3, n_heads=H, scale=scale,
                            batch=B, seq=S)                              # (B*S, D)
        # wo projection with residual-add + LayerNorm fused at writeback
        x = linear_add_ln(ctx, layer["wo"], layer["bo"], x,
                          layer["ln1_g"], layer["ln1_b"])

        h = linear(x, layer["w1"], layer["b1"], activation="gelu")
        # FFN-down projection with residual-add + LayerNorm fused at writeback
        x = linear_add_ln(h, layer["w2"], layer["b2"], x,
                          layer["ln2_g"], layer["ln2_b"])

    # Pooler + classifier tail: (B, num_labels) output is all masked lanes as a
    # dedicated pallas_call -> left to XLA fusion (per perf review).
    pooled = x.reshape(B, S, D)[:, 0, :].astype(jnp.float32)             # CLS token
    hcls = jnp.maximum(pooled @ params["pre_w"].astype(jnp.float32)
                       + params["pre_b"], 0.0)
    logits = hcls @ params["cls_w"].astype(jnp.float32) + params["cls_b"]
    return logits


# ----------------------------------------------------------------------------
if __name__ == "__main__":
    cfg = dict(token_dim=21, source_vocab=48, dim=32, n_heads=4, n_layers=2,
               ffn=64, max_pos=16, num_labels=2)

    key = jax.random.PRNGKey(0)
    pkey, ids_key = jax.random.split(key)
    params = init_params(pkey, cfg)

    B, S = 2, 8
    input_ids = jax.random.randint(ids_key, (B, S), 0, cfg["token_dim"], dtype=jnp.int32)
    attention_mask = jnp.ones((B, S), jnp.int32).at[1, 6:].set(0)

    @jax.jit
    def fwd(p, ids, mask):
        return r2dl_forward(p, cfg, ids, mask)

    logits = fwd(params, input_ids, attention_mask)
    jax.block_until_ready(logits)
    assert logits.shape == (B, cfg["num_labels"])
    print("KERNEL_OK")
</pallas_src>

<mosaic_0001>
module attributes {stable_mosaic.version = 11 : i64} {
  func.func @_add_ln_kernel(%arg0: i32, %arg1: memref<8x32xbf16, #tpu.memory_space<vmem>>, %arg2: memref<8x32xf32, #tpu.memory_space<vmem>>, %arg3: memref<1x32xf32, #tpu.memory_space<vmem>>, %arg4: memref<1x32xf32, #tpu.memory_space<vmem>>, %arg5: memref<8x32xbf16, #tpu.memory_space<vmem>>) attributes {dimension_semantics = [#tpu.dimension_semantics<parallel>], iteration_bounds = array<i64: 2>, scalar_prefetch = 0 : i64, scratch_operands = 0 : i64, tpu.core_type = #tpu.core_type<tc>, window_params = [{transform_indices = @transform_0, window_bounds = array<i64: 8, 32>}, {pipeline_mode = #tpu.pipeline_mode<synchronous>, transform_indices = @transform_1, window_bounds = array<i64: 8, 32>}, {pipeline_mode = #tpu.pipeline_mode<synchronous>, transform_indices = @transform_2, window_bounds = array<i64: 1, 32>}, {pipeline_mode = #tpu.pipeline_mode<synchronous>, transform_indices = @transform_3, window_bounds = array<i64: 1, 32>}, {transform_indices = @transform_4, window_bounds = array<i64: 8, 32>}]} {
    %c0 = arith.constant 0 : index
    %c0_0 = arith.constant 0 : index
    %0 = vector.load %arg1[%c0, %c0_0] : memref<8x32xbf16, #tpu.memory_space<vmem>>, vector<8x32xbf16>
    %1 = arith.extf %0 : vector<8x32xbf16> to vector<8x32xf32>
    %c0_1 = arith.constant 0 : index
    %c0_2 = arith.constant 0 : index
    %2 = vector.load %arg2[%c0_1, %c0_2] : memref<8x32xf32, #tpu.memory_space<vmem>>, vector<8x32xf32>
    %3 = arith.addf %1, %2 : vector<8x32xf32>
    %c0_3 = arith.constant 0 : index
    %c0_4 = arith.constant 0 : index
    %4 = vector.load %arg3[%c0_3, %c0_4] : memref<1x32xf32, #tpu.memory_space<vmem>>, vector<1x32xf32>
    %c0_5 = arith.constant 0 : index
    %c0_6 = arith.constant 0 : index
    %5 = vector.load %arg4[%c0_5, %c0_6] : memref<1x32xf32, #tpu.memory_space<vmem>>, vector<1x32xf32>
    %cst = arith.constant dense<0.000000e+00> : vector<8xf32>
    %6 = vector.multi_reduction <add>, %3, %cst [1] : vector<8x32xf32> to vector<8xf32>
    %7 = vector.shape_cast %6 : vector<8xf32> to vector<8x1xf32>
    %cst_7 = arith.constant 3.200000e+01 : f32
    %8 = vector.broadcast %cst_7 : f32 to vector<8x1xf32>
    %9 = arith.divf %7, %8 : vector<8x1xf32>
    %10 = vector.broadcast %9 : vector<8x1xf32> to vector<8x32xf32>
    %11 = arith.subf %3, %10 : vector<8x32xf32>
    %12 = arith.mulf %11, %11 : vector<8x32xf32>
    %cst_8 = arith.constant dense<0.000000e+00> : vector<8xf32>
    %13 = vector.multi_reduction <add>, %12, %cst_8 [1] : vector<8x32xf32> to vector<8xf32>
    %14 = vector.shape_cast %13 : vector<8xf32> to vector<8x1xf32>
    %cst_9 = arith.constant 3.200000e+01 : f32
    %15 = vector.broadcast %cst_9 : f32 to vector<8x1xf32>
    %16 = arith.divf %14, %15 : vector<8x1xf32>
    %17 = vector.broadcast %9 : vector<8x1xf32> to vector<8x32xf32>
    %18 = arith.subf %3, %17 : vector<8x32xf32>
    %cst_10 = arith.constant 9.99999996E-13 : f32
    %19 = vector.broadcast %cst_10 : f32 to vector<8x1xf32>
    %20 = arith.addf %16, %19 : vector<8x1xf32>
    %21 = math.rsqrt %20 : vector<8x1xf32>
    %22 = vector.broadcast %21 : vector<8x1xf32> to vector<8x32xf32>
    %23 = arith.mulf %18, %22 : vector<8x32xf32>
    %24 = vector.broadcast %4 : vector<1x32xf32> to vector<8x32xf32>
    %25 = arith.mulf %23, %24 : vector<8x32xf32>
    %26 = vector.broadcast %5 : vector<1x32xf32> to vector<8x32xf32>
    %27 = arith.addf %25, %26 : vector<8x32xf32>
    %28 = arith.truncf %27 : vector<8x32xf32> to vector<8x32xbf16>
    %c0_11 = arith.constant 0 : index
    %c0_12 = arith.constant 0 : index
    %29 = vector.load %arg5[%c0_11, %c0_12] : memref<8x32xbf16, #tpu.memory_space<vmem>>, vector<8x32xbf16>
    tpu.vector_store %arg5[%c0_11, %c0_12], %28 {strides = array<i32>} : memref<8x32xbf16, #tpu.memory_space<vmem>>, vector<8x32xbf16>,
    return
  }
  func.func @transform_0(%arg0: i32) -> (i32, i32) {
    %c0_i32 = arith.constant 0 : i32
    %c0_i32_0 = arith.constant 0 : i32
    return %arg0, %c0_i32 : i32, i32
  }
  func.func @transform_1(%arg0: i32) -> (i32, i32) {
    %c0_i32 = arith.constant 0 : i32
    %c0_i32_0 = arith.constant 0 : i32
    %c0_i32_1 = arith.constant 0 : i32
    return %c0_i32, %c0_i32_0 : i32, i32
  }
  func.func @transform_2(%arg0: i32) -> (i32, i32) {
    %c0_i32 = arith.constant 0 : i32
    %c0_i32_0 = arith.constant 0 : i32
    %c0_i32_1 = arith.constant 0 : i32
    return %c0_i32, %c0_i32_0 : i32, i32
  }
  func.func @transform_3(%arg0: i32) -> (i32, i32) {
    %c0_i32 = arith.constant 0 : i32
    %c0_i32_0 = arith.constant 0 : i32
    %c0_i32_1 = arith.constant 0 : i32
    return %c0_i32, %c0_i32_0 : i32, i32
  }
  func.func @transform_4(%arg0: i32) -> (i32, i32) {
    %c0_i32 = arith.constant 0 : i32
    %c0_i32_0 = arith.constant 0 : i32
    return %arg0, %c0_i32 : i32, i32
  }
}

module attributes {stable_mosaic.version = 11 : i64} {
  func.func @_linear_add_ln_1k_kernel(%arg0: i32, %arg1: memref<16x32xbf16, #tpu.memory_space<vmem>>, %arg2: memref<32x32xbf16, #tpu.memory_space<vmem>>, %arg3: memref<1x32xf32, #tpu.memory_space<vmem>>, %arg4: memref<16x32xbf16, #tpu.memory_space<vmem>>, %arg5: memref<1x32xf32, #tpu.memory_space<vmem>>, %arg6: memref<1x32xf32, #tpu.memory_space<vmem>>, %arg7: memref<16x32xbf16, #tpu.memory_space<vmem>>) attributes {dimension_semantics = [#tpu.dimension_semantics<parallel>], iteration_bounds = array<i64: 1>, scalar_prefetch = 0 : i64, scratch_operands = 0 : i64, tpu.core_type = #tpu.core_type<tc>, window_params = [{transform_indices = @transform_0, window_bounds = array<i64: 16, 32>}, {pipeline_mode = #tpu.pipeline_mode<synchronous>, transform_indices = @transform_1, window_bounds = array<i64: 32, 32>}, {pipeline_mode = #tpu.pipeline_mode<synchronous>, transform_indices = @transform_2, window_bounds = array<i64: 1, 32>}, {transform_indices = @transform_3, window_bounds = array<i64: 16, 32>}, {pipeline_mode = #tpu.pipeline_mode<synchronous>, transform_indices = @transform_4, window_bounds = array<i64: 1, 32>}, {pipeline_mode = #tpu.pipeline_mode<synchronous>, transform_indices = @transform_5, window_bounds = array<i64: 1, 32>}, {transform_indices = @transform_6, window_bounds = array<i64: 16, 32>}]} {
    %c0 = arith.constant 0 : index
    %c0_0 = arith.constant 0 : index
    %0 = vector.load %arg1[%c0, %c0_0] : memref<16x32xbf16, #tpu.memory_space<vmem>>, vector<16x32xbf16>
    %c0_1 = arith.constant 0 : index
    %c0_2 = arith.constant 0 : index
    %1 = vector.load %arg2[%c0_1, %c0_2] : memref<32x32xbf16, #tpu.memory_space<vmem>>, vector<32x32xbf16>
    %cst = arith.constant dense<0.000000e+00> : vector<16x32xf32>
    %2 = tpu.matmul %0, %1, %cst {dimension_numbers = #tpu.dot_dimension_numbers<[1], [0], [0], [1], [0, 0, 1, 1], [], []>} : vector<16x32xbf16>, vector<32x32xbf16>, vector<16x32xf32> -> vector<16x32xf32>
    %c0_3 = arith.constant 0 : index
    %c0_4 = arith.constant 0 : index
    %3 = vector.load %arg3[%c0_3, %c0_4] : memref<1x32xf32, #tpu.memory_space<vmem>>, vector<1x32xf32>
    %4 = vector.broadcast %3 : vector<1x32xf32> to vector<16x32xf32>
    %5 = arith.addf %2, %4 : vector<16x32xf32>
    %c0_5 = arith.constant 0 : index
    %c0_6 = arith.constant 0 : index
    %6 = vector.load %arg4[%c0_5, %c0_6] : memref<16x32xbf16, #tpu.memory_space<vmem>>, vector<16x32xbf16>
    %7 = arith.extf %6 : vector<16x32xbf16> to vector<16x32xf32>
    %8 = arith.addf %5, %7 : vector<16x32xf32>
    %c0_7 = arith.constant 0 : index
    %c0_8 = arith.constant 0 : index
    %9 = vector.load %arg5[%c0_7, %c0_8] : memref<1x32xf32, #tpu.memory_space<vmem>>, vector<1x32xf32>
    %c0_9 = arith.constant 0 : index
    %c0_10 = arith.constant 0 : index
    %10 = vector.load %arg6[%c0_9, %c0_10] : memref<1x32xf32, #tpu.memory_space<vmem>>, vector<1x32xf32>
    %cst_11 = arith.constant dense<0.000000e+00> : vector<16xf32>
    %11 = vector.multi_reduction <add>, %8, %cst_11 [1] : vector<16x32xf32> to vector<16xf32>
    %12 = vector.shape_cast %11 : vector<16xf32> to vector<16x1xf32>
    %cst_12 = arith.constant 3.200000e+01 : f32
    %13 = vector.broadcast %cst_12 : f32 to vector<16x1xf32>
    %14 = arith.divf %12, %13 : vector<16x1xf32>
    %15 = vector.broadcast %14 : vector<16x1xf32> to vector<16x32xf32>
    %16 = arith.subf %8, %15 : vector<16x32xf32>
    %17 = arith.mulf %16, %16 : vector<16x32xf32>
    %cst_13 = arith.constant dense<0.000000e+00> : vector<16xf32>
    %18 = vector.multi_reduction <add>, %17, %cst_13 [1] : vector<16x32xf32> to vector<16xf32>
    %19 = vector.shape_cast %18 : vector<16xf32> to vector<16x1xf32>
    %cst_14 = arith.constant 3.200000e+01 : f32
    %20 = vector.broadcast %cst_14 : f32 to vector<16x1xf32>
    %21 = arith.divf %19, %20 : vector<16x1xf32>
    %22 = vector.broadcast %14 : vector<16x1xf32> to vector<16x32xf32>
    %23 = arith.subf %8, %22 : vector<16x32xf32>
    %cst_15 = arith.constant 9.99999996E-13 : f32
    %24 = vector.broadcast %cst_15 : f32 to vector<16x1xf32>
    %25 = arith.addf %21, %24 : vector<16x1xf32>
    %26 = math.rsqrt %25 : vector<16x1xf32>
    %27 = vector.broadcast %26 : vector<16x1xf32> to vector<16x32xf32>
    %28 = arith.mulf %23, %27 : vector<16x32xf32>
    %29 = vector.broadcast %9 : vector<1x32xf32> to vector<16x32xf32>
    %30 = arith.mulf %28, %29 : vector<16x32xf32>
    %31 = vector.broadcast %10 : vector<1x32xf32> to vector<16x32xf32>
    %32 = arith.addf %30, %31 : vector<16x32xf32>
    %33 = arith.truncf %32 : vector<16x32xf32> to vector<16x32xbf16>
    %c0_16 = arith.constant 0 : index
    %c0_17 = arith.constant 0 : index
    %34 = vector.load %arg7[%c0_16, %c0_17] : memref<16x32xbf16, #tpu.memory_space<vmem>>, vector<16x32xbf16>
    tpu.vector_store %arg7[%c0_16, %c0_17], %33 {strides = array<i32>} : memref<16x32xbf16, #tpu.memory_space<vmem>>, vector<16x32xbf16>,
    return
  }
  func.func @transform_0(%arg0: i32) -> (i32, i32) {
    %c0_i32 = arith.constant 0 : i32
    %c0_i32_0 = arith.constant 0 : i32
    return %arg0, %c0_i32 : i32, i32
  }
  func.func @transform_1(%arg0: i32) -> (i32, i32) {
    %c0_i32 = arith.constant 0 : i32
    %c0_i32_0 = arith.constant 0 : i32
    %c0_i32_1 = arith.constant 0 : i32
    return %c0_i32, %c0_i32_0 : i32, i32
  }
  func.func @transform_2(%arg0: i32) -> (i32, i32) {
    %c0_i32 = arith.constant 0 : i32
    %c0_i32_0 = arith.constant 0 : i32
    %c0_i32_1 = arith.constant 0 : i32
    return %c0_i32, %c0_i32_0 : i32, i32
  }
  func.func @transform_3(%arg0: i32) -> (i32, i32) {
    %c0_i32 = arith.constant 0 : i32
    %c0_i32_0 = arith.constant 0 : i32
    return %arg0, %c0_i32 : i32, i32
  }
  func.func @transform_4(%arg0: i32) -> (i32, i32) {
    %c0_i32 = arith.constant 0 : i32
    %c0_i32_0 = arith.constant 0 : i32
    %c0_i32_1 = arith.constant 0 : i32
    return %c0_i32, %c0_i32_0 : i32, i32
  }
  func.func @transform_5(%arg0: i32) -> (i32, i32) {
    %c0_i32 = arith.constant 0 : i32
    %c0_i32_0 = arith.constant 0 : i32
    %c0_i32_1 = arith.constant 0 : i32
    return %c0_i32, %c0_i32_0 : i32, i32
  }
  func.func @transform_6(%arg0: i32) -> (i32, i32) {
    %c0_i32 = arith.constant 0 : i32
    %c0_i32_0 = arith.constant 0 : i32
    return %arg0, %c0_i32 : i32, i32
  }
}

module attributes {stable_mosaic.version = 11 : i64} {
  func.func @_linear_1k_kernel(%arg0: i32, %arg1: i32, %arg2: memref<16x32xbf16, #tpu.memory_space<vmem>>, %arg3: memref<32x96xbf16, #tpu.memory_space<vmem>>, %arg4: memref<1x96xf32, #tpu.memory_space<vmem>>, %arg5: memref<16x96xbf16, #tpu.memory_space<vmem>>) attributes {dimension_semantics = [#tpu.dimension_semantics<parallel>, #tpu.dimension_semantics<parallel>], iteration_bounds = array<i64: 1, 1>, scalar_prefetch = 0 : i64, scratch_operands = 0 : i64, tpu.core_type = #tpu.core_type<tc>, window_params = [{transform_indices = @transform_0, window_bounds = array<i64: 16, 32>}, {transform_indices = @transform_1, window_bounds = array<i64: 32, 96>}, {transform_indices = @transform_2, window_bounds = array<i64: 1, 96>}, {transform_indices = @transform_3, window_bounds = array<i64: 16, 96>}]} {
    %c0 = arith.constant 0 : index
    %c0_0 = arith.constant 0 : index
    %0 = vector.load %arg2[%c0, %c0_0] : memref<16x32xbf16, #tpu.memory_space<vmem>>, vector<16x32xbf16>
    %c0_1 = arith.constant 0 : index
    %c0_2 = arith.constant 0 : index
    %1 = vector.load %arg3[%c0_1, %c0_2] : memref<32x96xbf16, #tpu.memory_space<vmem>>, vector<32x96xbf16>
    %cst = arith.constant dense<0.000000e+00> : vector<16x96xf32>
    %2 = tpu.matmul %0, %1, %cst {dimension_numbers = #tpu.dot_dimension_numbers<[1], [0], [0], [1], [0, 0, 1, 1], [], []>} : vector<16x32xbf16>, vector<32x96xbf16>, vector<16x96xf32> -> vector<16x96xf32>
    %c0_3 = arith.constant 0 : index
    %c0_4 = arith.constant 0 : index
    %3 = vector.load %arg4[%c0_3, %c0_4] : memref<1x96xf32, #tpu.memory_space<vmem>>, vector<1x96xf32>
    %4 = vector.broadcast %3 : vector<1x96xf32> to vector<16x96xf32>
    %5 = arith.addf %2, %4 : vector<16x96xf32>
    %6 = arith.truncf %5 : vector<16x96xf32> to vector<16x96xbf16>
    %c0_5 = arith.constant 0 : index
    %c0_6 = arith.constant 0 : index
    %7 = vector.load %arg5[%c0_5, %c0_6] : memref<16x96xbf16, #tpu.memory_space<vmem>>, vector<16x96xbf16>
    tpu.vector_store %arg5[%c0_5, %c0_6], %6 {strides = array<i32>} : memref<16x96xbf16, #tpu.memory_space<vmem>>, vector<16x96xbf16>,
    return
  }
  func.func @transform_0(%arg0: i32, %arg1: i32) -> (i32, i32) {
    %c0_i32 = arith.constant 0 : i32
    %c0_i32_0 = arith.constant 0 : i32
    return %arg0, %c0_i32 : i32, i32
  }
  func.func @transform_1(%arg0: i32, %arg1: i32) -> (i32, i32) {
    %c0_i32 = arith.constant 0 : i32
    %c0_i32_0 = arith.constant 0 : i32
    return %c0_i32, %arg1 : i32, i32
  }
  func.func @transform_2(%arg0: i32, %arg1: i32) -> (i32, i32) {
    %c0_i32 = arith.constant 0 : i32
    %c0_i32_0 = arith.constant 0 : i32
    return %c0_i32, %arg1 : i32, i32
  }
  func.func @transform_3(%arg0: i32, %arg1: i32) -> (i32, i32) {
    %c0_i32 = arith.constant 0 : i32
    return %arg0, %arg1 : i32, i32
  }
}

module attributes {stable_mosaic.version = 11 : i64} {
  func.func @_attn_full_kernel(%arg0: i32, %arg1: memref<8x96xbf16, #tpu.memory_space<vmem>>, %arg2: memref<1x1x8xf32, #tpu.memory_space<vmem>>, %arg3: memref<8x32xbf16, #tpu.memory_space<vmem>>) attributes {dimension_semantics = [#tpu.dimension_semantics<parallel>], iteration_bounds = array<i64: 2>, scalar_prefetch = 0 : i64, scratch_operands = 0 : i64, tpu.core_type = #tpu.core_type<tc>, window_params = [{transform_indices = @transform_0, window_bounds = array<i64: 8, 96>}, {transform_indices = @transform_1, window_bounds = array<i64: 1, 1, 8>}, {transform_indices = @transform_2, window_bounds = array<i64: 8, 32>}]} {
    %c0 = arith.constant 0 : index
    %c0_0 = arith.constant 0 : index
    %0 = vector.load %arg1[%c0, %c0_0] : memref<8x96xbf16, #tpu.memory_space<vmem>>, vector<8x96xbf16>
    %1 = vector.extract_strided_slice %0 {offsets = [0, 0], sizes = [8, 32], strides = [1, 1]} : vector<8x96xbf16> to vector<8x32xbf16>
    %2 = vector.extract_strided_slice %0 {offsets = [0, 32], sizes = [8, 32], strides = [1, 1]} : vector<8x96xbf16> to vector<8x32xbf16>
    %3 = vector.extract_strided_slice %0 {offsets = [0, 64], sizes = [8, 32], strides = [1, 1]} : vector<8x96xbf16> to vector<8x32xbf16>
    %c0_1 = arith.constant 0 : index
    %c0_2 = arith.constant 0 : index
    %c0_3 = arith.constant 0 : index
    %4 = vector.load %arg2[%c0_1, %c0_2, %c0_3] : memref<1x1x8xf32, #tpu.memory_space<vmem>>, vector<1x1x8xf32>
    %5 = vector.shape_cast %4 : vector<1x1x8xf32> to vector<1x8xf32>
    %6 = vector.extract_strided_slice %1 {offsets = [0, 0], sizes = [8, 8], strides = [1, 1]} : vector<8x32xbf16> to vector<8x8xbf16>
    %7 = vector.extract_strided_slice %2 {offsets = [0, 0], sizes = [8, 8], strides = [1, 1]} : vector<8x32xbf16> to vector<8x8xbf16>
    %8 = vector.extract_strided_slice %3 {offsets = [0, 0], sizes = [8, 8], strides = [1, 1]} : vector<8x32xbf16> to vector<8x8xbf16>
    %cst = arith.constant dense<0.000000e+00> : vector<8x8xf32>
    %9 = tpu.matmul %6, %7, %cst {dimension_numbers = #tpu.dot_dimension_numbers<[1], [1], [0], [0], [0, 0, 1, 0], [], []>} : vector<8x8xbf16>, vector<8x8xbf16>, vector<8x8xf32> -> vector<8x8xf32>
    %cst_4 = arith.constant 0.353553385 : f32
    %10 = vector.broadcast %cst_4 : f32 to vector<8x8xf32>
    %11 = arith.mulf %9, %10 : vector<8x8xf32>
    %cst_5 = arith.constant 0.000000e+00 : f32
    %12 = vector.broadcast %cst_5 : f32 to vector<1x8xf32>
    %13 = arith.cmpf ogt, %5, %12 : vector<1x8xf32>
    %cst_6 = arith.constant -1.000000e+09 : f32
    %14 = vector.shape_cast %13 : vector<1x8xi1> to vector<1x8xi1>
    %15 = vector.broadcast %14 : vector<1x8xi1> to vector<8x8xi1>
    %16 = vector.broadcast %cst_6 : f32 to vector<8x8xf32>
    %17 = arith.select %15, %11, %16 : vector<8x8xi1>, vector<8x8xf32>
    %cst_7 = arith.constant dense<0xFF800000> : vector<8xf32>
    %18 = vector.multi_reduction <maximumf>, %17, %cst_7 [1] : vector<8x8xf32> to vector<8xf32>
    %19 = vector.shape_cast %18 : vector<8xf32> to vector<8x1xf32>
    %20 = vector.broadcast %19 : vector<8x1xf32> to vector<8x8xf32>
    %21 = arith.subf %17, %20 : vector<8x8xf32>
    %22 = math.exp %21 : vector<8x8xf32>
    %cst_8 = arith.constant dense<0.000000e+00> : vector<8xf32>
    %23 = vector.multi_reduction <add>, %22, %cst_8 [1] : vector<8x8xf32> to vector<8xf32>
    %24 = vector.shape_cast %23 : vector<8xf32> to vector<8x1xf32>
    %25 = tpu.reciprocal %24 {approx = true} : vector<8x1xf32> -> vector<8x1xf32>
    %26 = vector.broadcast %25 : vector<8x1xf32> to vector<8x8xf32>
    %27 = arith.mulf %22, %26 : vector<8x8xf32>
    %28 = arith.truncf %27 : vector<8x8xf32> to vector<8x8xbf16>
    %cst_9 = arith.constant dense<0.000000e+00> : vector<8x8xf32>
    %29 = tpu.matmul %28, %8, %cst_9 {dimension_numbers = #tpu.dot_dimension_numbers<[1], [0], [0], [1], [0, 0, 1, 1], [], []>} : vector<8x8xbf16>, vector<8x8xbf16>, vector<8x8xf32> -> vector<8x8xf32>
    %30 = arith.truncf %29 : vector<8x8xf32> to vector<8x8xbf16>
    %c0_10 = arith.constant 0 : index
    %c0_11 = arith.constant 0 : index
    %31 = vector.load %arg3[%c0_10, %c0_11] : memref<8x32xbf16, #tpu.memory_space<vmem>>, vector<8x8xbf16>
    tpu.vector_store %arg3[%c0_10, %c0_11], %30 {strides = array<i32>} : memref<8x32xbf16, #tpu.memory_space<vmem>>, vector<8x8xbf16>,
    %32 = vector.extract_strided_slice %1 {offsets = [0, 8], sizes = [8, 8], strides = [1, 1]} : vector<8x32xbf16> to vector<8x8xbf16>
    %33 = vector.extract_strided_slice %2 {offsets = [0, 8], sizes = [8, 8], strides = [1, 1]} : vector<8x32xbf16> to vector<8x8xbf16>
    %34 = vector.extract_strided_slice %3 {offsets = [0, 8], sizes = [8, 8], strides = [1, 1]} : vector<8x32xbf16> to vector<8x8xbf16>
    %cst_12 = arith.constant dense<0.000000e+00> : vector<8x8xf32>
    %35 = tpu.matmul %32, %33, %cst_12 {dimension_numbers = #tpu.dot_dimension_numbers<[1], [1], [0], [0], [0, 0, 1, 0], [], []>} : vector<8x8xbf16>, vector<8x8xbf16>, vector<8x8xf32> -> vector<8x8xf32>
    %cst_13 = arith.constant 0.353553385 : f32
    %36 = vector.broadcast %cst_13 : f32 to vector<8x8xf32>
    %37 = arith.mulf %35, %36 : vector<8x8xf32>
    %cst_14 = arith.constant 0.000000e+00 : f32
    %38 = vector.broadcast %cst_14 : f32 to vector<1x8xf32>
    %39 = arith.cmpf ogt, %5, %38 : vector<1x8xf32>
    %cst_15 = arith.constant -1.000000e+09 : f32
    %40 = vector.shape_cast %39 : vector<1x8xi1> to vector<1x8xi1>
    %41 = vector.broadcast %40 : vector<1x8xi1> to vector<8x8xi1>
    %42 = vector.broadcast %cst_15 : f32 to vector<8x8xf32>
    %43 = arith.select %41, %37, %42 : vector<8x8xi1>, vector<8x8xf32>
    %cst_16 = arith.constant dense<0xFF800000> : vector<8xf32>
    %44 = vector.multi_reduction <maximumf>, %43, %cst_16 [1] : vector<8x8xf32> to vector<8xf32>
    %45 = vector.shape_cast %44 : vector<8xf32> to vector<8x1xf32>
    %46 = vector.broadcast %45 : vector<8x1xf32> to vector<8x8xf32>
    %47 = arith.subf %43, %46 : vector<8x8xf32>
    %48 = math.exp %47 : vector<8x8xf32>
    %cst_17 = arith.constant dense<0.000000e+00> : vector<8xf32>
    %49 = vector.multi_reduction <add>, %48, %cst_17 [1] : vector<8x8xf32> to vector<8xf32>
    %50 = vector.shape_cast %49 : vector<8xf32> to vector<8x1xf32>
    %51 = tpu.reciprocal %50 {approx = true} : vector<8x1xf32> -> vector<8x1xf32>
    %52 = vector.broadcast %51 : vector<8x1xf32> to vector<8x8xf32>
    %53 = arith.mulf %48, %52 : vector<8x8xf32>
    %54 = arith.truncf %53 : vector<8x8xf32> to vector<8x8xbf16>
    %cst_18 = arith.constant dense<0.000000e+00> : vector<8x8xf32>
    %55 = tpu.matmul %54, %34, %cst_18 {dimension_numbers = #tpu.dot_dimension_numbers<[1], [0], [0], [1], [0, 0, 1, 1], [], []>} : vector<8x8xbf16>, vector<8x8xbf16>, vector<8x8xf32> -> vector<8x8xf32>
    %56 = arith.truncf %55 : vector<8x8xf32> to vector<8x8xbf16>
    %c0_19 = arith.constant 0 : index
    %c8 = arith.constant 8 : index
    %57 = vector.load %arg3[%c0_19, %c8] : memref<8x32xbf16, #tpu.memory_space<vmem>>, vector<8x8xbf16>
    tpu.vector_store %arg3[%c0_19, %c8], %56 {strides = array<i32>} : memref<8x32xbf16, #tpu.memory_space<vmem>>, vector<8x8xbf16>,
    %58 = vector.extract_strided_slice %1 {offsets = [0, 16], sizes = [8, 8], strides = [1, 1]} : vector<8x32xbf16> to vector<8x8xbf16>
    %59 = vector.extract_strided_slice %2 {offsets = [0, 16], sizes = [8, 8], strides = [1, 1]} : vector<8x32xbf16> to vector<8x8xbf16>
    %60 = vector.extract_strided_slice %3 {offsets = [0, 16], sizes = [8, 8], strides = [1, 1]} : vector<8x32xbf16> to vector<8x8xbf16>
    %cst_20 = arith.constant dense<0.000000e+00> : vector<8x8xf32>
    %61 = tpu.matmul %58, %59, %cst_20 {dimension_numbers = #tpu.dot_dimension_numbers<[1], [1], [0], [0], [0, 0, 1, 0], [], []>} : vector<8x8xbf16>, vector<8x8xbf16>, vector<8x8xf32> -> vector<8x8xf32>
    %cst_21 = arith.constant 0.353553385 : f32
    %62 = vector.broadcast %cst_21 : f32 to vector<8x8xf32>
    %63 = arith.mulf %61, %62 : vector<8x8xf32>
    %cst_22 = arith.constant 0.000000e+00 : f32
    %64 = vector.broadcast %cst_22 : f32 to vector<1x8xf32>
    %65 = arith.cmpf ogt, %5, %64 : vector<1x8xf32>
    %cst_23 = arith.constant -1.000000e+09 : f32
    %66 = vector.shape_cast %65 : vector<1x8xi1> to vector<1x8xi1>
    %67 = vector.broadcast %66 : vector<1x8xi1> to vector<8x8xi1>
    %68 = vector.broadcast %cst_23 : f32 to vector<8x8xf32>
    %69 = arith.select %67, %63, %68 : vector<8x8xi1>, vector<8x8xf32>
    %cst_24 = arith.constant dense<0xFF800000> : vector<8xf32>
    %70 = vector.multi_reduction <maximumf>, %69, %cst_24 [1] : vector<8x8xf32> to vector<8xf32>
    %71 = vector.shape_cast %70 : vector<8xf32> to vector<8x1xf32>
    %72 = vector.broadcast %71 : vector<8x1xf32> to vector<8x8xf32>
    %73 = arith.subf %69, %72 : vector<8x8xf32>
    %74 = math.exp %73 : vector<8x8xf32>
    %cst_25 = arith.constant dense<0.000000e+00> : vector<8xf32>
    %75 = vector.multi_reduction <add>, %74, %cst_25 [1] : vector<8x8xf32> to vector<8xf32>
    %76 = vector.shape_cast %75 : vector<8xf32> to vector<8x1xf32>
    %77 = tpu.reciprocal %76 {approx = true} : vector<8x1xf32> -> vector<8x1xf32>
    %78 = vector.broadcast %77 : vector<8x1xf32> to vector<8x8xf32>
    %79 = arith.mulf %74, %78 : vector<8x8xf32>
    %80 = arith.truncf %79 : vector<8x8xf32> to vector<8x8xbf16>
    %cst_26 = arith.constant dense<0.000000e+00> : vector<8x8xf32>
    %81 = tpu.matmul %80, %60, %cst_26 {dimension_numbers = #tpu.dot_dimension_numbers<[1], [0], [0], [1], [0, 0, 1, 1], [], []>} : vector<8x8xbf16>, vector<8x8xbf16>, vector<8x8xf32> -> vector<8x8xf32>
    %82 = arith.truncf %81 : vector<8x8xf32> to vector<8x8xbf16>
    %c0_27 = arith.constant 0 : index
    %c16 = arith.constant 16 : index
    %83 = vector.load %arg3[%c0_27, %c16] : memref<8x32xbf16, #tpu.memory_space<vmem>>, vector<8x8xbf16>
    tpu.vector_store %arg3[%c0_27, %c16], %82 {strides = array<i32>} : memref<8x32xbf16, #tpu.memory_space<vmem>>, vector<8x8xbf16>,
    %84 = vector.extract_strided_slice %1 {offsets = [0, 24], sizes = [8, 8], strides = [1, 1]} : vector<8x32xbf16> to vector<8x8xbf16>
    %85 = vector.extract_strided_slice %2 {offsets = [0, 24], sizes = [8, 8], strides = [1, 1]} : vector<8x32xbf16> to vector<8x8xbf16>
    %86 = vector.extract_strided_slice %3 {offsets = [0, 24], sizes = [8, 8], strides = [1, 1]} : vector<8x32xbf16> to vector<8x8xbf16>
    %cst_28 = arith.constant dense<0.000000e+00> : vector<8x8xf32>
    %87 = tpu.matmul %84, %85, %cst_28 {dimension_numbers = #tpu.dot_dimension_numbers<[1], [1], [0], [0], [0, 0, 1, 0], [], []>} : vector<8x8xbf16>, vector<8x8xbf16>, vector<8x8xf32> -> vector<8x8xf32>
    %cst_29 = arith.constant 0.353553385 : f32
    %88 = vector.broadcast %cst_29 : f32 to vector<8x8xf32>
    %89 = arith.mulf %87, %88 : vector<8x8xf32>
    %cst_30 = arith.constant 0.000000e+00 : f32
    %90 = vector.broadcast %cst_30 : f32 to vector<1x8xf32>
    %91 = arith.cmpf ogt, %5, %90 : vector<1x8xf32>
    %cst_31 = arith.constant -1.000000e+09 : f32
    %92 = vector.shape_cast %91 : vector<1x8xi1> to vector<1x8xi1>
    %93 = vector.broadcast %92 : vector<1x8xi1> to vector<8x8xi1>
    %94 = vector.broadcast %cst_31 : f32 to vector<8x8xf32>
    %95 = arith.select %93, %89, %94 : vector<8x8xi1>, vector<8x8xf32>
    %cst_32 = arith.constant dense<0xFF800000> : vector<8xf32>
    %96 = vector.multi_reduction <maximumf>, %95, %cst_32 [1] : vector<8x8xf32> to vector<8xf32>
    %97 = vector.shape_cast %96 : vector<8xf32> to vector<8x1xf32>
    %98 = vector.broadcast %97 : vector<8x1xf32> to vector<8x8xf32>
    %99 = arith.subf %95, %98 : vector<8x8xf32>
    %100 = math.exp %99 : vector<8x8xf32>
    %cst_33 = arith.constant dense<0.000000e+00> : vector<8xf32>
    %101 = vector.multi_reduction <add>, %100, %cst_33 [1] : vector<8x8xf32> to vector<8xf32>
    %102 = vector.shape_cast %101 : vector<8xf32> to vector<8x1xf32>
    %103 = tpu.reciprocal %102 {approx = true} : vector<8x1xf32> -> vector<8x1xf32>
    %104 = vector.broadcast %103 : vector<8x1xf32> to vector<8x8xf32>
    %105 = arith.mulf %100, %104 : vector<8x8xf32>
    %106 = arith.truncf %105 : vector<8x8xf32> to vector<8x8xbf16>
    %cst_34 = arith.constant dense<0.000000e+00> : vector<8x8xf32>
    %107 = tpu.matmul %106, %86, %cst_34 {dimension_numbers = #tpu.dot_dimension_numbers<[1], [0], [0], [1], [0, 0, 1, 1], [], []>} : vector<8x8xbf16>, vector<8x8xbf16>, vector<8x8xf32> -> vector<8x8xf32>
    %108 = arith.truncf %107 : vector<8x8xf32> to vector<8x8xbf16>
    %c0_35 = arith.constant 0 : index
    %c24 = arith.constant 24 : index
    %109 = vector.load %arg3[%c0_35, %c24] : memref<8x32xbf16, #tpu.memory_space<vmem>>, vector<8x8xbf16>
    tpu.vector_store %arg3[%c0_35, %c24], %108 {strides = array<i32>} : memref<8x32xbf16, #tpu.memory_space<vmem>>, vector<8x8xbf16>,
    return
  }
  func.func @transform_0(%arg0: i32) -> (i32, i32) {
    %c0_i32 = arith.constant 0 : i32
    %c0_i32_0 = arith.constant 0 : i32
    return %arg0, %c0_i32 : i32, i32
  }
  func.func @transform_1(%arg0: i32) -> (i32, i32, i32) {
    %c0_i32 = arith.constant 0 : i32
    %c0_i32_0 = arith.constant 0 : i32
    %c0_i32_1 = arith.constant 0 : i32
    return %arg0, %c0_i32, %c0_i32_0 : i32, i32, i32
  }
  func.func @transform_2(%arg0: i32) -> (i32, i32) {
    %c0_i32 = arith.constant 0 : i32
    %c0_i32_0 = arith.constant 0 : i32
    return %arg0, %c0_i32 : i32, i32
  }
}

module attributes {stable_mosaic.version = 11 : i64} {
  func.func @_linear_1k_kernel(%arg0: i32, %arg1: i32, %arg2: memref<16x32xbf16, #tpu.memory_space<vmem>>, %arg3: memref<32x64xbf16, #tpu.memory_space<vmem>>, %arg4: memref<1x64xf32, #tpu.memory_space<vmem>>, %arg5: memref<16x64xbf16, #tpu.memory_space<vmem>>) attributes {dimension_semantics = [#tpu.dimension_semantics<parallel>, #tpu.dimension_semantics<parallel>], iteration_bounds = array<i64: 1, 1>, scalar_prefetch = 0 : i64, scratch_operands = 0 : i64, tpu.core_type = #tpu.core_type<tc>, window_params = [{transform_indices = @transform_0, window_bounds = array<i64: 16, 32>}, {transform_indices = @transform_1, window_bounds = array<i64: 32, 64>}, {transform_indices = @transform_2, window_bounds = array<i64: 1, 64>}, {transform_indices = @transform_3, window_bounds = array<i64: 16, 64>}]} {
    %c0 = arith.constant 0 : index
    %c0_0 = arith.constant 0 : index
    %0 = vector.load %arg2[%c0, %c0_0] : memref<16x32xbf16, #tpu.memory_space<vmem>>, vector<16x32xbf16>
    %c0_1 = arith.constant 0 : index
    %c0_2 = arith.constant 0 : index
    %1 = vector.load %arg3[%c0_1, %c0_2] : memref<32x64xbf16, #tpu.memory_space<vmem>>, vector<32x64xbf16>
    %cst = arith.constant dense<0.000000e+00> : vector<16x64xf32>
    %2 = tpu.matmul %0, %1, %cst {dimension_numbers = #tpu.dot_dimension_numbers<[1], [0], [0], [1], [0, 0, 1, 1], [], []>} : vector<16x32xbf16>, vector<32x64xbf16>, vector<16x64xf32> -> vector<16x64xf32>
    %c0_3 = arith.constant 0 : index
    %c0_4 = arith.constant 0 : index
    %3 = vector.load %arg4[%c0_3, %c0_4] : memref<1x64xf32, #tpu.memory_space<vmem>>, vector<1x64xf32>
    %4 = vector.broadcast %3 : vector<1x64xf32> to vector<16x64xf32>
    %5 = arith.addf %2, %4 : vector<16x64xf32>
    %6 = arith.mulf %5, %5 : vector<16x64xf32>
    %7 = arith.mulf %5, %6 : vector<16x64xf32>
    %cst_5 = arith.constant 4.471500e-02 : f32
    %8 = vector.broadcast %cst_5 : f32 to vector<16x64xf32>
    %9 = arith.mulf %8, %7 : vector<16x64xf32>
    %10 = arith.addf %5, %9 : vector<16x64xf32>
    %cst_6 = arith.constant 0.797884583 : f32
    %11 = vector.broadcast %cst_6 : f32 to vector<16x64xf32>
    %12 = arith.mulf %11, %10 : vector<16x64xf32>
    %13 = math.tanh %12 : vector<16x64xf32>
    %cst_7 = arith.constant 1.000000e+00 : f32
    %14 = vector.broadcast %cst_7 : f32 to vector<16x64xf32>
    %15 = arith.addf %14, %13 : vector<16x64xf32>
    %cst_8 = arith.constant 5.000000e-01 : f32
    %16 = vector.broadcast %cst_8 : f32 to vector<16x64xf32>
    %17 = arith.mulf %16, %15 : vector<16x64xf32>
    %18 = arith.mulf %5, %17 : vector<16x64xf32>
    %19 = arith.truncf %18 : vector<16x64xf32> to vector<16x64xbf16>
    %c0_9 = arith.constant 0 : index
    %c0_10 = arith.constant 0 : index
    %20 = vector.load %arg5[%c0_9, %c0_10] : memref<16x64xbf16, #tpu.memory_space<vmem>>, vector<16x64xbf16>
    tpu.vector_store %arg5[%c0_9, %c0_10], %19 {strides = array<i32>} : memref<16x64xbf16, #tpu.memory_space<vmem>>, vector<16x64xbf16>,
    return
  }
  func.func @transform_0(%arg0: i32, %arg1: i32) -> (i32, i32) {
    %c0_i32 = arith.constant 0 : i32
    %c0_i32_0 = arith.constant 0 : i32
    return %arg0, %c0_i32 : i32, i32
  }
  func.func @transform_1(%arg0: i32, %arg1: i32) -> (i32, i32) {
    %c0_i32 = arith.constant 0 : i32
    %c0_i32_0 = arith.constant 0 : i32
    return %c0_i32, %arg1 : i32, i32
  }
  func.func @transform_2(%arg0: i32, %arg1: i32) -> (i32, i32) {
    %c0_i32 = arith.constant 0 : i32
    %c0_i32_0 = arith.constant 0 : i32
    return %c0_i32, %arg1 : i32, i32
  }
  func.func @transform_3(%arg0: i32, %arg1: i32) -> (i32, i32) {
    %c0_i32 = arith.constant 0 : i32
    return %arg0, %arg1 : i32, i32
  }
}

module attributes {stable_mosaic.version = 11 : i64} {
  func.func @_linear_add_ln_1k_kernel(%arg0: i32, %arg1: memref<16x64xbf16, #tpu.memory_space<vmem>>, %arg2: memref<64x32xbf16, #tpu.memory_space<vmem>>, %arg3: memref<1x32xf32, #tpu.memory_space<vmem>>, %arg4: memref<16x32xbf16, #tpu.memory_space<vmem>>, %arg5: memref<1x32xf32, #tpu.memory_space<vmem>>, %arg6: memref<1x32xf32, #tpu.memory_space<vmem>>, %arg7: memref<16x32xbf16, #tpu.memory_space<vmem>>) attributes {dimension_semantics = [#tpu.dimension_semantics<parallel>], iteration_bounds = array<i64: 1>, scalar_prefetch = 0 : i64, scratch_operands = 0 : i64, tpu.core_type = #tpu.core_type<tc>, window_params = [{transform_indices = @transform_0, window_bounds = array<i64: 16, 64>}, {pipeline_mode = #tpu.pipeline_mode<synchronous>, transform_indices = @transform_1, window_bounds = array<i64: 64, 32>}, {pipeline_mode = #tpu.pipeline_mode<synchronous>, transform_indices = @transform_2, window_bounds = array<i64: 1, 32>}, {transform_indices = @transform_3, window_bounds = array<i64: 16, 32>}, {pipeline_mode = #tpu.pipeline_mode<synchronous>, transform_indices = @transform_4, window_bounds = array<i64: 1, 32>}, {pipeline_mode = #tpu.pipeline_mode<synchronous>, transform_indices = @transform_5, window_bounds = array<i64: 1, 32>}, {transform_indices = @transform_6, window_bounds = array<i64: 16, 32>}]} {
    %c0 = arith.constant 0 : index
    %c0_0 = arith.constant 0 : index
    %0 = vector.load %arg1[%c0, %c0_0] : memref<16x64xbf16, #tpu.memory_space<vmem>>, vector<16x64xbf16>
    %c0_1 = arith.constant 0 : index
    %c0_2 = arith.constant 0 : index
    %1 = vector.load %arg2[%c0_1, %c0_2] : memref<64x32xbf16, #tpu.memory_space<vmem>>, vector<64x32xbf16>
    %cst = arith.constant dense<0.000000e+00> : vector<16x32xf32>
    %2 = tpu.matmul %0, %1, %cst {dimension_numbers = #tpu.dot_dimension_numbers<[1], [0], [0], [1], [0, 0, 1, 1], [], []>} : vector<16x64xbf16>, vector<64x32xbf16>, vector<16x32xf32> -> vector<16x32xf32>
    %c0_3 = arith.constant 0 : index
    %c0_4 = arith.constant 0 : index
    %3 = vector.load %arg3[%c0_3, %c0_4] : memref<1x32xf32, #tpu.memory_space<vmem>>, vector<1x32xf32>
    %4 = vector.broadcast %3 : vector<1x32xf32> to vector<16x32xf32>
    %5 = arith.addf %2, %4 : vector<16x32xf32>
    %c0_5 = arith.constant 0 : index
    %c0_6 = arith.constant 0 : index
    %6 = vector.load %arg4[%c0_5, %c0_6] : memref<16x32xbf16, #tpu.memory_space<vmem>>, vector<16x32xbf16>
    %7 = arith.extf %6 : vector<16x32xbf16> to vector<16x32xf32>
    %8 = arith.addf %5, %7 : vector<16x32xf32>
    %c0_7 = arith.constant 0 : index
    %c0_8 = arith.constant 0 : index
    %9 = vector.load %arg5[%c0_7, %c0_8] : memref<1x32xf32, #tpu.memory_space<vmem>>, vector<1x32xf32>
    %c0_9 = arith.constant 0 : index
    %c0_10 = arith.constant 0 : index
    %10 = vector.load %arg6[%c0_9, %c0_10] : memref<1x32xf32, #tpu.memory_space<vmem>>, vector<1x32xf32>
    %cst_11 = arith.constant dense<0.000000e+00> : vector<16xf32>
    %11 = vector.multi_reduction <add>, %8, %cst_11 [1] : vector<16x32xf32> to vector<16xf32>
    %12 = vector.shape_cast %11 : vector<16xf32> to vector<16x1xf32>
    %cst_12 = arith.constant 3.200000e+01 : f32
    %13 = vector.broadcast %cst_12 : f32 to vector<16x1xf32>
    %14 = arith.divf %12, %13 : vector<16x1xf32>
    %15 = vector.broadcast %14 : vector<16x1xf32> to vector<16x32xf32>
    %16 = arith.subf %8, %15 : vector<16x32xf32>
    %17 = arith.mulf %16, %16 : vector<16x32xf32>
    %cst_13 = arith.constant dense<0.000000e+00> : vector<16xf32>
    %18 = vector.multi_reduction <add>, %17, %cst_13 [1] : vector<16x32xf32> to vector<16xf32>
    %19 = vector.shape_cast %18 : vector<16xf32> to vector<16x1xf32>
    %cst_14 = arith.constant 3.200000e+01 : f32
    %20 = vector.broadcast %cst_14 : f32 to vector<16x1xf32>
    %21 = arith.divf %19, %20 : vector<16x1xf32>
    %22 = vector.broadcast %14 : vector<16x1xf32> to vector<16x32xf32>
    %23 = arith.subf %8, %22 : vector<16x32xf32>
    %cst_15 = arith.constant 9.99999996E-13 : f32
    %24 = vector.broadcast %cst_15 : f32 to vector<16x1xf32>
    %25 = arith.addf %21, %24 : vector<16x1xf32>
    %26 = math.rsqrt %25 : vector<16x1xf32>
    %27 = vector.broadcast %26 : vector<16x1xf32> to vector<16x32xf32>
    %28 = arith.mulf %23, %27 : vector<16x32xf32>
    %29 = vector.broadcast %9 : vector<1x32xf32> to vector<16x32xf32>
    %30 = arith.mulf %28, %29 : vector<16x32xf32>
    %31 = vector.broadcast %10 : vector<1x32xf32> to vector<16x32xf32>
    %32 = arith.addf %30, %31 : vector<16x32xf32>
    %33 = arith.truncf %32 : vector<16x32xf32> to vector<16x32xbf16>
    %c0_16 = arith.constant 0 : index
    %c0_17 = arith.constant 0 : index
    %34 = vector.load %arg7[%c0_16, %c0_17] : memref<16x32xbf16, #tpu.memory_space<vmem>>, vector<16x32xbf16>
    tpu.vector_store %arg7[%c0_16, %c0_17], %33 {strides = array<i32>} : memref<16x32xbf16, #tpu.memory_space<vmem>>, vector<16x32xbf16>,
    return
  }
  func.func @transform_0(%arg0: i32) -> (i32, i32) {
    %c0_i32 = arith.constant 0 : i32
    %c0_i32_0 = arith.constant 0 : i32
    return %arg0, %c0_i32 : i32, i32
  }
  func.func @transform_1(%arg0: i32) -> (i32, i32) {
    %c0_i32 = arith.constant 0 : i32
    %c0_i32_0 = arith.constant 0 : i32
    %c0_i32_1 = arith.constant 0 : i32
    return %c0_i32, %c0_i32_0 : i32, i32
  }
  func.func @transform_2(%arg0: i32) -> (i32, i32) {
    %c0_i32 = arith.constant 0 : i32
    %c0_i32_0 = arith.constant 0 : i32
    %c0_i32_1 = arith.constant 0 : i32
    return %c0_i32, %c0_i32_0 : i32, i32
  }
  func.func @transform_3(%arg0: i32) -> (i32, i32) {
    %c0_i32 = arith.constant 0 : i32
    %c0_i32_0 = arith.constant 0 : i32
    return %arg0, %c0_i32 : i32, i32
  }
  func.func @transform_4(%arg0: i32) -> (i32, i32) {
    %c0_i32 = arith.constant 0 : i32
    %c0_i32_0 = arith.constant 0 : i32
    %c0_i32_1 = arith.constant 0 : i32
    return %c0_i32, %c0_i32_0 : i32, i32
  }
  func.func @transform_5(%arg0: i32) -> (i32, i32) {
    %c0_i32 = arith.constant 0 : i32
    %c0_i32_0 = arith.constant 0 : i32
    %c0_i32_1 = arith.constant 0 : i32
    return %c0_i32, %c0_i32_0 : i32, i32
  }
  func.func @transform_6(%arg0: i32) -> (i32, i32) {
    %c0_i32 = arith.constant 0 : i32
    %c0_i32_0 = arith.constant 0 : i32
    return %arg0, %c0_i32 : i32, i32
  }
}

</mosaic_0001>

<llo_original>
// kernel: fwd.12
$region0: #{fwd.12}
  #allocation0 [shape = 'u32[]', space=smem, size = 0x4, offset = 0x4, fixed_abs, tag = 'smem constant byte address 0x4 - core index']
  #allocation1 [shape = 'u32[144,128]{1,0:T(1,128)}', space=vmem, size = 0x12000, scoped, tag = 'internal scratch']
  %s0 = inlined_call_operand.vmem [shape: bf16[16,32], index: 0, kind: input, shape index: {}]
  %s1 = inlined_call_operand.vmem [shape: bf16[32,96], index: 1, kind: input, shape index: {}]
  %s2 = inlined_call_operand.vmem [shape: f32[1,96], index: 2, kind: input, shape index: {}]
  %s3 = inlined_call_operand.vmem [shape: bf16[16,96], index: 3, kind: output, shape index: {}]
  %s4 = sld [smem:[#allocation0]]
  $region22: #{fwd.12} parent=0
    _
  %s6 = ssub.s32 1, %s4
  %s7 = scalar_select 0, %s6, %s4
  // Predicated region
  $region2: #{fwd.12} parent=0 // pred_check
    _
  $region3: #{fwd.12} parent=0 // pred_check_branch
    %9 = sbr.rel (0) target = $region5
  $region4: #{fwd.12} parent=0 // pred_region
    _
  $region5: #{fwd.12} parent=0 // pred_fallthru
    _
  // Predicated region
  $region6: #{fwd.12} parent=0 // pred_check
    _
  $region7: #{fwd.12} parent=0 // pred_check_branch
    %11 = sbr.rel (0) target = $region9
  $region8: #{fwd.12} parent=0 // pred_region
    _
  $region9: #{fwd.12} parent=0 // pred_fallthru
    _
  // Predicated region
  $region10: #{fwd.12} parent=0 // pred_check
    _
  $region11: #{fwd.12} parent=0 // pred_check_branch
    %13 = sbr.rel (0) target = $region13
  $region12: #{fwd.12} parent=0 // pred_region
    _
  $region13: #{fwd.12} parent=0 // pred_fallthru
    _
  %v15 = vld [vmem:[%s0] sm:$0xf]
  %v16 = vld [vmem:[%s0 + $0x4] sm:$0xf]
  %v17 = vld [vmem:[%s1] sm:$0xf]
  %v18 = vld [vmem:[%s1 + $0x4] sm:$0xf]
  %v19 = vld [vmem:[%s1 + $0x8] sm:$0xf]
  %v20 = vld [vmem:[%s1 + $0xc] sm:$0xf]
  %v21 = vld [vmem:[%s2] sm:$0x1]
  %v23 = vlaneseq
  %v24 = vshrl.u32 %v23, 7
  %v25 = vsub.s32 0, %v24
  %v26 = vrot.slane %v21, %v25
  %v30 = vunpack.c.l.b16 %v15
  %v31 = vunpack.c.l.b16 %v16
  %v32 = vpack.c.b16 %v31, %v30
  %v37 = vunpack.c.l.b16 %v17
  %v38 = vunpack.c.l.b16 %v18
  %v39 = vunpack.c.l.b16 %v19
  %v40 = vunpack.c.l.b16 %v20
  %v41 = vpack.c.b16 %v38, %v37
  %v42 = vpack.c.b16 %v40, %v39
  %vm45 = vcmask 261120
  %v47 = vsel %vm45, %v32, 0
  %49 = vmatprep.subr.bf16.mxu0 0
  %50 = vmatpush1.bf16.msra.mxu0 %v41
  %51 = vmatprep.subr.bf16.mxu0 0
  %52 = vmatpush1.bf16.msra.mxu0 %v42
  %53 = vmatprep.subr.bf16.mxu0 0
  %54 = vmatpush1.bf16.msra.mxu0 0
  %55 = vmatprep.subr.bf16.mxu0 0
  %56 = vmatpush1.bf16.msra.mxu0 0
  %57 = vmatprep.subr.bf16.mxu0 0
  %58 = vmatpush1.bf16.msra.mxu0 0
  %59 = vmatprep.subr.bf16.mxu0 0
  %60 = vmatpush1.bf16.msra.mxu0 0
  %61 = vmatprep.subr.bf16.mxu0 0
  %62 = vmatpush1.bf16.msra.mxu0 0
  %63 = vmatprep.subr.bf16.mxu0 0
  %64 = vmatpush1.bf16.msra.mxu0 0
  %65 = vmatprep.subr.bf16.mxu0 0
  %66 = vmatpush1.bf16.msra.mxu0 0
  %67 = vmatprep.subr.bf16.mxu0 0
  %68 = vmatpush1.bf16.msra.mxu0 0
  %69 = vmatprep.subr.bf16.mxu0 0
  %70 = vmatpush1.bf16.msra.mxu0 0
  %71 = vmatprep.subr.bf16.mxu0 0
  %72 = vmatpush1.bf16.msra.mxu0 0
  %73 = vmatprep.subr.bf16.mxu0 0
  %74 = vmatpush1.bf16.msra.mxu0 0
  %75 = vmatprep.subr.bf16.mxu0 0
  %76 = vmatpush1.bf16.msra.mxu0 0
  %77 = vmatprep.subr.bf16.mxu0 0
  %78 = vmatpush1.bf16.msra.mxu0 0
  %79 = vmatprep.subr.bf16.mxu0 0
  %80 = vmatpush1.bf16.msra.mxu0 0
  %81 = vmatprep.mubr.bf16.mxu0 0
  %82 = vmatmul.mubr.bf16.gmra.mrb[0].mxu0 %v47
  %v83 = vpop.f32.mrb[0].mxu0
  %v84 = vadd.f32 %v26, %v83
  %v85 = vpop.f32.mrb[0].mxu0
  %v86 = vpop.f32.mrb[0].mxu0
  %v87 = vadd.f32 %v26, %v86
  %v88 = vpop.f32.mrb[0].mxu0
  %89 = vdwg.mxu0
  %v90 = vpack.c.bf16 %v87, %v84
  %v92 = vunpack.c.l.b16 %v90
  %v93 = vunpack.c.h.b16 %v90
  %v94 = vpack.c.b16 %v92, %v92
  %v95 = vpack.c.b16 %v93, %v93
  %vm98 = vcmask 781312
  %99 = vst.msk [vmem:[%s3] sm:$0xf] %vm98, %v94
  %100 = vst.msk [vmem:[%s3 + $0x4] sm:$0xf] %vm98, %v95
  // Predicated region
  $region14: #{fwd.12} parent=0 // pred_check
    _
  $region15: #{fwd.12} parent=0 // pred_check_branch
    %102 = sbr.rel (0) target = $region17
  $region16: #{fwd.12} parent=0 // pred_region
    _
  $region17: #{fwd.12} parent=0 // pred_fallthru
    _
  // Predicated region
  $region18: #{fwd.12} parent=0 // pred_check
    _
  $region19: #{fwd.12} parent=0 // pred_check_branch
    %104 = sbr.rel (0) target = $region21
  $region20: #{fwd.12} parent=0 // pred_region
    _
  $region21: #{fwd.12} parent=0 // pred_fallthru
    _

// kernel: fwd.14
$region0: #{fwd.14}
  #allocation0 [shape = 'u32[]', space=smem, size = 0x4, offset = 0x4, fixed_abs, tag = 'smem constant byte address 0x4 - core index']
  #allocation1 [shape = 'u32[144,128]{1,0:T(1,128)}', space=vmem, size = 0x12000, scoped, tag = 'internal scratch']
  %s0 = inlined_call_operand.vmem [shape: bf16[16,32], index: 0, kind: input, shape index: {}]
  %s1 = inlined_call_operand.vmem [shape: bf16[32,32], index: 1, kind: input, shape index: {}]
  %s2 = inlined_call_operand.vmem [shape: f32[1,32], index: 2, kind: input, shape index: {}]
  %s3 = inlined_call_operand.vmem [shape: bf16[16,32], index: 3, kind: input, shape index: {}]
  %s4 = inlined_call_operand.vmem [shape: f32[1,32], index: 4, kind: input, shape index: {}]
  %s5 = inlined_call_operand.vmem [shape: f32[1,32], index: 5, kind: input, shape index: {}]
  %s6 = inlined_call_operand.vmem [shape: bf16[16,32], index: 6, kind: output, shape index: {}]
  %s7 = sld [smem:[#allocation0]]
  $region34: #{fwd.14} parent=0
    _
  %s9 = ssub.s32 1, %s7
  %s10 = scalar_select 0, %s9, %s7
  // Predicated region
  $region2: #{fwd.14} parent=0 // pred_check
    _
  $region3: #{fwd.14} parent=0 // pred_check_branch
    %12 = sbr.rel (0) target = $region5
  $region4: #{fwd.14} parent=0 // pred_region
    _
  $region5: #{fwd.14} parent=0 // pred_fallthru
    _
  // Predicated region
  $region6: #{fwd.14} parent=0 // pred_check
    _
  $region7: #{fwd.14} parent=0 // pred_check_branch
    %14 = sbr.rel (0) target = $region9
  $region8: #{fwd.14} parent=0 // pred_region
    _
  $region9: #{fwd.14} parent=0 // pred_fallthru
    _
  // Predicated region
  $region10: #{fwd.14} parent=0 // pred_check
    _
  $region11: #{fwd.14} parent=0 // pred_check_branch
    %16 = sbr.rel (0) target = $region13
  $region12: #{fwd.14} parent=0 // pred_region
    _
  $region13: #{fwd.14} parent=0 // pred_fallthru
    _
  // Predicated region
  $region14: #{fwd.14} parent=0 // pred_check
    _
  $region15: #{fwd.14} parent=0 // pred_check_branch
    %18 = sbr.rel (0) target = $region17
  $region16: #{fwd.14} parent=0 // pred_region
    _
  $region17: #{fwd.14} parent=0 // pred_fallthru
    _
  // Predicated region
  $region18: #{fwd.14} parent=0 // pred_check
    _
  $region19: #{fwd.14} parent=0 // pred_check_branch
    %20 = sbr.rel (0) target = $region21
  $region20: #{fwd.14} parent=0 // pred_region
    _
  $region21: #{fwd.14} parent=0 // pred_fallthru
    _
  // Predicated region
  $region22: #{fwd.14} parent=0 // pred_check
    _
  $region23: #{fwd.14} parent=0 // pred_check_branch
    %22 = sbr.rel (0) target = $region25
  $region24: #{fwd.14} parent=0 // pred_region
    _
  $region25: #{fwd.14} parent=0 // pred_fallthru
    _
  %v24 = vld [vmem:[%s0] sm:$0xf]
  %v25 = vld [vmem:[%s0 + $0x4] sm:$0xf]
  %v26 = vld [vmem:[%s1] sm:$0xf]
  %v27 = vld [vmem:[%s1 + $0x4] sm:$0xf]
  %v28 = vld [vmem:[%s1 + $0x8] sm:$0xf]
  %v29 = vld [vmem:[%s1 + $0xc] sm:$0xf]
  %v30 = vld [vmem:[%s2] sm:$0x1]
  %v32 = vlaneseq
  %v33 = vshrl.u32 %v32, 7
  %v34 = vsub.s32 0, %v33
  %v35 = vrot.slane %v30, %v34
  %v39 = vunpack.c.l.b16 %v24
  %v40 = vunpack.c.l.b16 %v25
  %v41 = vpack.c.b16 %v40, %v39
  %v46 = vunpack.c.l.b16 %v26
  %v47 = vunpack.c.l.b16 %v27
  %v48 = vunpack.c.l.b16 %v28
  %v49 = vunpack.c.l.b16 %v29
  %v50 = vpack.c.b16 %v47, %v46
  %v51 = vpack.c.b16 %v49, %v48
  %vm54 = vcmask 261120
  %v56 = vsel %vm54, %v41, 0
  %58 = vmatprep.subr.bf16.mxu0 0
  %59 = vmatpush1.bf16.msra.mxu0 %v50
  %60 = vmatprep.subr.bf16.mxu0 0
  %61 = vmatpush1.bf16.msra.mxu0 %v51
  %62 = vmatprep.subr.bf16.mxu0 0
  %63 = vmatpush1.bf16.msra.mxu0 0
  %64 = vmatprep.subr.bf16.mxu0 0
  %65 = vmatpush1.bf16.msra.mxu0 0
  %66 = vmatprep.subr.bf16.mxu0 0
  %67 = vmatpush1.bf16.msra.mxu0 0
  %68 = vmatprep.subr.bf16.mxu0 0
  %69 = vmatpush1.bf16.msra.mxu0 0
  %70 = vmatprep.subr.bf16.mxu0 0
  %71 = vmatpush1.bf16.msra.mxu0 0
  %72 = vmatprep.subr.bf16.mxu0 0
  %73 = vmatpush1.bf16.msra.mxu0 0
  %74 = vmatprep.subr.bf16.mxu0 0
  %75 = vmatpush1.bf16.msra.mxu0 0
  %76 = vmatprep.subr.bf16.mxu0 0
  %77 = vmatpush1.bf16.msra.mxu0 0
  %78 = vmatprep.subr.bf16.mxu0 0
  %79 = vmatpush1.bf16.msra.mxu0 0
  %80 = vmatprep.subr.bf16.mxu0 0
  %81 = vmatpush1.bf16.msra.mxu0 0
  %82 = vmatprep.subr.bf16.mxu0 0
  %83 = vmatpush1.bf16.msra.mxu0 0
  %84 = vmatprep.subr.bf16.mxu0 0
  %85 = vmatpush1.bf16.msra.mxu0 0
  %86 = vmatprep.subr.bf16.mxu0 0
  %87 = vmatpush1.bf16.msra.mxu0 0
  %88 = vmatprep.subr.bf16.mxu0 0
  %89 = vmatpush1.bf16.msra.mxu0 0
  %90 = vmatprep.mubr.bf16.mxu0 0
  %91 = vmatmul.mubr.bf16.gmra.mrb[0].mxu0 %v56
  %v92 = vpop.f32.mrb[0].mxu0
  %v93 = vadd.f32 %v35, %v92
  %v94 = vpop.f32.mrb[0].mxu0
  %v95 = vpop.f32.mrb[0].mxu0
  %v96 = vadd.f32 %v35, %v95
  %v97 = vpop.f32.mrb[0].mxu0
  %98 = vdwg.mxu0
  %v99 = vld [vmem:[%s3] sm:$0xf]
  %v100 = vld [vmem:[%s3 + $0x4] sm:$0xf]
  %v101 = vunpack.c.l.bf16 %v99
  %v102 = vunpack.c.l.bf16 %v100
  %v103 = vadd.f32 %v93, %v101
  %v104 = vadd.f32 %v96, %v102
  %v105 = vld [vmem:[%s4] sm:$0x1]
  %v106 = vld [vmem:[%s5] sm:$0x1]
  %v107 = vsel %vm54, %v103, 0.0
  %108 = vadd.xlane.f32.xlu0 %v107
  %v109 = vpop.xlane.xlu0 %108
  %v110 = vsel %vm54, %v104, 0.0
  %111 = vadd.xlane.f32.xlu0 %v110
  %v112 = vpop.xlane.xlu0 %111
  %v113 = vrcp.pop 32.0
  %v114 = vmul.f32 %v109, %v113
  %v115 = vmul.f32 %v112, %v113
  %v116 = vsub.f32 %v103, %v114
  %v117 = vsub.f32 %v104, %v115
  %v118 = vmul.f32 %v116, %v116
  %v119 = vmul.f32 %v117, %v117
  %v120 = vsel %vm54, %v118, 0.0
  %121 = vadd.xlane.f32.xlu0 %v120
  %v122 = vpop.xlane.xlu0 %121
  %v123 = vsel %vm54, %v119, 0.0
  %124 = vadd.xlane.f32.xlu0 %v123
  %v125 = vpop.xlane.xlu0 %124
  %v126 = vmul.f32 %v122, %v113
  %v127 = vmul.f32 %v125, %v113
  %v128 = vadd.f32 %v126, 1e-12
  %v129 = vadd.f32 %v127, 1e-12
  %v130 = vrsqrt.pop %v128
  %v131 = vrsqrt.pop %v129
  %v132 = vmul.f32 %v116, %v130
  %v133 = vmul.f32 %v117, %v131
  %v135 = vlaneseq
  %v136 = vshrl.u32 %v135, 7
  %v137 = vsub.s32 0, %v136
  %v138 = vrot.slane %v105, %v137
  %v140 = vmul.f32 %v132, %v138
  %v141 = vmul.f32 %v133, %v138
  %v143 = vlaneseq
  %v144 = vshrl.u32 %v143, 7
  %v145 = vsub.s32 0, %v144
  %v146 = vrot.slane %v106, %v145
  %v148 = vadd.f32 %v140, %v146
  %v149 = vadd.f32 %v141, %v146
  %v150 = vpack.c.bf16 %v149, %v148
  %v152 = vunpack.c.l.b16 %v150
  %v153 = vunpack.c.h.b16 %v150
  %v154 = vpack.c.b16 %v152, %v152
  %v155 = vpack.c.b16 %v153, %v153
  %vm158 = vcmask 257024
  %159 = vst.msk [vmem:[%s6] sm:$0xf] %vm158, %v154
  %160 = vst.msk [vmem:[%s6 + $0x4] sm:$0xf] %vm158, %v155
  // Predicated region
  $region26: #{fwd.14} parent=0 // pred_check
    _
  $region27: #{fwd.14} parent=0 // pred_check_branch
    %162 = sbr.rel (0) target = $region29
  $region28: #{fwd.14} parent=0 // pred_region
    _
  $region29: #{fwd.14} parent=0 // pred_fallthru
    _
  // Predicated region
  $region30: #{fwd.14} parent=0 // pred_check
    _
  $region31: #{fwd.14} parent=0 // pred_check_branch
    %164 = sbr.rel (0) target = $region33
  $region32: #{fwd.14} parent=0 // pred_region
    _
  $region33: #{fwd.14} parent=0 // pred_fallthru
    _

// kernel: fwd.11
$region0: #{fwd.11}
  #allocation0 [shape = 'u32[]', space=smem, size = 0x4, offset = 0x4, fixed_abs, tag = 'smem constant byte address 0x4 - core index']
  #allocation1 [shape = 'u32[144,128]{1,0:T(1,128)}', space=vmem, size = 0x12000, scoped, tag = 'internal scratch']
  %s0 = inlined_call_operand.vmem [shape: bf16[16,32], index: 0, kind: input, shape index: {}]
  %s1 = inlined_call_operand.vmem [shape: f32[8,32], index: 1, kind: input, shape index: {}]
  %s2 = inlined_call_operand.vmem [shape: f32[1,32], index: 2, kind: input, shape index: {}]
  %s3 = inlined_call_operand.vmem [shape: f32[1,32], index: 3, kind: input, shape index: {}]
  %s4 = inlined_call_operand.vmem [shape: bf16[16,32], index: 4, kind: output, shape index: {}]
  %s5 = sld [smem:[#allocation0]]
  $region49: #{fwd.11} parent=0
    _
  %s7 = ssub.s32 1, %s5
  %s8 = scalar_select 0, %s7, %s5
  loop: start=0, step=1, limit=4
  $region2: #{fwd.11} parent=0 // loop_pre_header
    _
  $region3: #{fwd.11} parent=0 // loop_header
    %s10 = sphi 0, %s14
    %p11 = scmp.ge.s32.totalorder %s10, 4
    %s20 = sphi 0, %s22
    %s23 = sphi 0, %s20
    %s24 = sphi 0, %s23
    %s40 = sphi 0, %s24
    %s44 = sphi 0, %s44
    %s46 = sphi 0, %s44
    %s47 = sphi 0, %s46
    %s61 = sphi 0, %s47
    %s65 = sphi 0, %s65
    %s67 = sphi 0, %s65
    %s68 = sphi 0, %s67
    %s82 = sphi 0, %s68
    %s86 = sphi 0, %s86
    %s88 = sphi 0, %s86
    %s89 = sphi 0, %s88
    %s103 = sphi 0, %s89
    %s109 = sphi 0, %s111
    %s112 = sphi 0, %s109
    %s113 = sphi 0, %s112
    %s129 = sphi 0, %s113
  $region4: #{fwd.11} parent=0 // loop_header_branch
    %13 = sbr.rel (%p11) target = $region8
  $region5: #{fwd.11} parent=0 // loop_body
    %s15 = ssub.s32 %s10, 1
    %s16 = ssub.s32 %s10, 2
    %s17 = sadd.s32 %s10, 1
    %s18 = ssub.s32 %s10, %s17
    %p19 = scmp.eq.s32.totalorder %s18, 0
    %s21 = sadd.s32 %s20, 1
    %s22 = scalar_select %p19, %s20, %s21
    %p25 = pneg %p19
    %p26 = scmp.eq.s32.totalorder %s10, 1
    %p27 = por %p25, %p26
    %p28 = scmp.ne.s32.totalorder %s20, %s23
    %p29 = scmp.eq.s32.totalorder %s10, 0
    %p30 = por %p28, %p29
    %p31 = scmp.ne.s32.totalorder %s20, %s23
    %p32 = scmp.eq.s32.totalorder %s15, 1
    %p33 = por %p31, %p32
    %p34 = scmp.ne.s32.totalorder %s23, %s24
    %p35 = scmp.eq.s32.totalorder %s15, 0
    %p36 = por %p34, %p35
    %p37 = scmp.ne.s32.totalorder %s23, %s24
    %p38 = scmp.eq.s32.totalorder %s16, 1
    %p39 = por %p37, %p38
    %p41 = scmp.ne.s32.totalorder %s24, %s40
    %p42 = scmp.eq.s32.totalorder %s16, 0
    %p43 = por %p41, %p42
    %s45 = sadd.s32 %s44, 1
    %p48 = scmp.eq.s32.totalorder %s10, 1
    %p49 = scmp.ne.s32.totalorder %s44, %s46
    %p50 = scmp.eq.s32.totalorder %s10, 0
    %p51 = por %p49, %p50
    %p52 = scmp.ne.s32.totalorder %s44, %s46
    %p53 = scmp.eq.s32.totalorder %s15, 1
    %p54 = por %p52, %p53
    %p55 = scmp.ne.s32.totalorder %s46, %s47
    %p56 = scmp.eq.s32.totalorder %s15, 0
    %p57 = por %p55, %p56
    %p58 = scmp.ne.s32.totalorder %s46, %s47
    %p59 = scmp.eq.s32.totalorder %s16, 1
    %p60 = por %p58, %p59
    %p62 = scmp.ne.s32.totalorder %s47, %s61
    %p63 = scmp.eq.s32.totalorder %s16, 0
    %p64 = por %p62, %p63
    %s66 = sadd.s32 %s65, 1
    %p69 = scmp.eq.s32.totalorder %s10, 1
    %p70 = scmp.ne.s32.totalorder %s65, %s67
    %p71 = scmp.eq.s32.totalorder %s10, 0
    %p72 = por %p70, %p71
    %p73 = scmp.ne.s32.totalorder %s65, %s67
    %p74 = scmp.eq.s32.totalorder %s15, 1
    %p75 = por %p73, %p74
    %p76 = scmp.ne.s32.totalorder %s67, %s68
    %p77 = scmp.eq.s32.totalorder %s15, 0
    %p78 = por %p76, %p77
    %p79 = scmp.ne.s32.totalorder %s67, %s68
    %p80 = scmp.eq.s32.totalorder %s16, 1
    %p81 = por %p79, %p80
    %p83 = scmp.ne.s32.totalorder %s68, %s82
    %p84 = scmp.eq.s32.totalorder %s16, 0
    %p85 = por %p83, %p84
    %s87 = sadd.s32 %s86, 1
    %p90 = scmp.eq.s32.totalorder %s10, 1
    %p91 = scmp.ne.s32.totalorder %s86, %s88
    %p92 = scmp.eq.s32.totalorder %s10, 0
    %p93 = por %p91, %p92
    %p94 = scmp.ne.s32.totalorder %s86, %s88
    %p95 = scmp.eq.s32.totalorder %s15, 1
    %p96 = por %p94, %p95
    %p97 = scmp.ne.s32.totalorder %s88, %s89
    %p98 = scmp.eq.s32.totalorder %s15, 0
    %p99 = por %p97, %p98
    %p100 = scmp.ne.s32.totalorder %s88, %s89
    %p101 = scmp.eq.s32.totalorder %s16, 1
    %p102 = por %p100, %p101
    %p104 = scmp.ne.s32.totalorder %s89, %s103
    %p105 = scmp.eq.s32.totalorder %s16, 0
    %p106 = por %p104, %p105
    %s107 = ssub.s32 %s10, %s17
    %p108 = scmp.eq.s32.totalorder %s107, 0
    %s110 = sadd.s32 %s109, 1
    %s111 = scalar_select %p108, %s109, %s110
    %p114 = pneg %p108
    %p115 = scmp.eq.s32.totalorder %s10, 1
    %p116 = por %p114, %p115
    %p117 = scmp.ne.s32.totalorder %s109, %s112
    %p118 = scmp.eq.s32.totalorder %s10, 0
    %p119 = por %p117, %p118
    %p120 = scmp.ne.s32.totalorder %s109, %s112
    %p121 = scmp.eq.s32.totalorder %s15, 1
    %p122 = por %p120, %p121
    %p123 = scmp.ne.s32.totalorder %s112, %s113
    %p124 = scmp.eq.s32.totalorder %s15, 0
    %p125 = por %p123, %p124
    %p126 = scmp.ne.s32.totalorder %s112, %s113
    %p127 = scmp.eq.s32.totalorder %s16, 1
    %p128 = por %p126, %p127
    %p130 = scmp.ne.s32.totalorder %s113, %s129
    %p131 = scmp.eq.s32.totalorder %s16, 0
    %p132 = por %p130, %p131
    %p133 = scmp.le.s32.totalorder 1, %s10
    %p134 = scmp.lt.s32.totalorder %s10, 3
    %p135 = pnand %p133, %p134
    %p136 = pneg %p135
    // Predicated region
    $region9: #{fwd.11} parent=5 // pred_check
      _
    $region10: #{fwd.11} parent=5 // pred_check_branch
      %138 = sbr.rel (%p135) target = $region12
    $region11: #{fwd.11} parent=5 // pred_region
      %s139 = ssub.s32 %s10, 1
      // Predicated region
      $region13: #{fwd.11} parent=11 // pred_check
        %p140 = pneg %p57
      $region14: #{fwd.11} parent=11 // pred_check_branch
        %142 = sbr.rel (%p140) target = $region16
      $region15: #{fwd.11} parent=11 // pred_region
        _
      $region16: #{fwd.11} parent=11 // pred_fallthru
        _
      // Predicated region
      $region17: #{fwd.11} parent=11 // pred_check
        %p143 = pneg %p78
      $region18: #{fwd.11} parent=11 // pred_check_branch
        %145 = sbr.rel (%p143) target = $region20
      $region19: #{fwd.11} parent=11 // pred_region
        _
      $region20: #{fwd.11} parent=11 // pred_fallthru
        _
      // Predicated region
      $region21: #{fwd.11} parent=11 // pred_check
        %p146 = pneg %p99
      $region22: #{fwd.11} parent=11 // pred_check_branch
        %148 = sbr.rel (%p146) target = $region24
      $region23: #{fwd.11} parent=11 // pred_region
        _
      $region24: #{fwd.11} parent=11 // pred_fallthru
        _
    $region12: #{fwd.11} parent=5 // pred_fallthru
      _
    %p149 = scmp.lt.s32.totalorder %s10, 2
    // Predicated region
    $region25: #{fwd.11} parent=5 // pred_check
      %p150 = pneg %p149
    $region26: #{fwd.11} parent=5 // pred_check_branch
      %152 = sbr.rel (%p150) target = $region28
    $region27: #{fwd.11} parent=5 // pred_region
      // Predicated region
      $region29: #{fwd.11} parent=27 // pred_check
        %p153 = pneg %p30
      $region30: #{fwd.11} parent=27 // pred_check_branch
        %155 = sbr.rel (%p153) target = $region32
      $region31: #{fwd.11} parent=27 // pred_region
        %p156 = scmp.lt.s32.totalorder %s10, 1
        %s157 = scalar_select %p156, %s10, 1
        %s158 = smul.addr %s157, 4
        %s159 = scalar_lea.vmem %s0, %s158
      $region32: #{fwd.11} parent=27 // pred_fallthru
        _
    $region28: #{fwd.11} parent=5 // pred_fallthru
      _
    %p160 = scmp.le.s32.totalorder 1, %s10
    %p161 = scmp.lt.s32.totalorder %s10, 3
    %p162 = pnand %p160, %p161
    %p163 = pneg %p162
    // Predicated region
    $region33: #{fwd.11} parent=5 // pred_check
      _
    $region34: #{fwd.11} parent=5 // pred_check_branch
      %165 = sbr.rel (%p162) target = $region36
    $region35: #{fwd.11} parent=5 // pred_region
      %s166 = ssub.s32 %s10, 1
      %p167 = scmp.lt.s32.totalorder %s15, 1
      %s168 = scalar_select %p167, %s15, 1
      %s169 = smul.addr %s168, 4
      %s170 = scalar_lea.vmem %s0, %s169
      %p171 = pneg %p36
      %p172 = pneg %p33
      %p173 = pneg %p57
      %p174 = pneg %p54
      %p175 = pneg %p78
      %p176 = pneg %p75
      %p177 = pneg %p99
      %p178 = pneg %p96
      %p179 = pneg %p125
      %p180 = pneg %p122
      %p181 = scmp.lt.s32.totalorder %s15, 1
      %s182 = scalar_select %p181, %s15, 1
      %s183 = smul.addr %s182, 4
      %s184 = scalar_lea.vmem %s4, %s183
      %p185 = scmp.lt.s32.totalorder %s15, 1
      %s186 = scalar_select %p185, %s15, 1
      %s187 = smul.addr %s186, 4
      %s188 = scalar_lea.vmem %s0, %s187
      %p189 = scmp.lt.s32.totalorder %s15, 1
      %s190 = scalar_select %p189, %s15, 1
      %s191 = smul.addr %s190, 4
      %s192 = scalar_lea.vmem %s4, %s191
      %v193 = vld [vmem:[%s188] sm:$0xf]
      %v194 = vunpack.c.l.bf16 %v193
      %v195 = vld [vmem:[%s1] sm:$0xff]
      %v196 = vadd.f32 %v194, %v195
      %v197 = vld [vmem:[%s2] sm:$0x1]
      %v198 = vld [vmem:[%s3] sm:$0x1]
      %vm199 = vcmask 261120
      %v200 = vsel %vm199, %v196, 0.0
      %201 = vadd.xlane.f32.xlu0 %v200
      %v202 = vpop.xlane.xlu0 %201
      %v203 = vrcp.pop 32.0
      %v204 = vmul.f32 %v202, %v203
      %v205 = vsub.f32 %v196, %v204
      %v206 = vmul.f32 %v205, %v205
      %v207 = vsel %vm199, %v206, 0.0
      %208 = vadd.xlane.f32.xlu0 %v207
      %v209 = vpop.xlane.xlu0 %208
      %v210 = vmul.f32 %v209, %v203
      %v211 = vadd.f32 %v210, 1e-12
      %v212 = vrsqrt.pop %v211
      %v213 = vmul.f32 %v205, %v212
      %v215 = vlaneseq
      %v216 = vshrl.u32 %v215, 7
      %v217 = vsub.s32 0, %v216
      %v218 = vrot.slane %v197, %v217
      %v220 = vmul.f32 %v213, %v218
      %v222 = vlaneseq
      %v223 = vshrl.u32 %v222, 7
      %v224 = vsub.s32 0, %v223
      %v225 = vrot.slane %v198, %v224
      %v227 = vadd.f32 %v220, %v225
      %v228 = vpack.c.bf16 %v227, %v227
      %vm229 = vcmask 257024
      %230 = vst.msk [vmem:[%s192] sm:$0xf] %vm229, %v228
      %p231 = scmp.lt.s32.totalorder %s15, 1
      %s232 = scalar_select %p231, %s15, 1
      %s233 = smul.addr %s232, 4
      %s234 = scalar_lea.vmem %s4, %s233
      // Predicated region
      $region37: #{fwd.11} parent=35 // pred_check
        %p235 = pneg %p122
      $region38: #{fwd.11} parent=35 // pred_check_branch
        %237 = sbr.rel (%p235) target = $region40
      $region39: #{fwd.11} parent=35 // pred_region
        _
      $region40: #{fwd.11} parent=35 // pred_fallthru
        _
    $region36: #{fwd.11} parent=5 // pred_fallthru
      _
    %p238 = scmp.le.s32.totalorder 2, %s10
    // Predicated region
    $region41: #{fwd.11} parent=5 // pred_check
      %p239 = pneg %p238
    $region42: #{fwd.11} parent=5 // pred_check_branch
      %241 = sbr.rel (%p239) target = $region44
    $region43: #{fwd.11} parent=5 // pred_region
      %s242 = ssub.s32 %s10, 2
      // Predicated region
      $region45: #{fwd.11} parent=43 // pred_check
        %p243 = pneg %p128
      $region46: #{fwd.11} parent=43 // pred_check_branch
        %245 = sbr.rel (%p243) target = $region48
      $region47: #{fwd.11} parent=43 // pred_region
        %p246 = scmp.lt.s32.totalorder %s16, 1
        %s247 = scalar_select %p246, %s16, 1
        %s248 = smul.addr %s247, 4
        %s249 = scalar_lea.vmem %s4, %s248
      $region48: #{fwd.11} parent=43 // pred_fallthru
        _
    $region44: #{fwd.11} parent=5 // pred_fallthru
      _
  $region6: #{fwd.11} parent=0 // loop_footer
    %s14 = sadd.s32 1, %s10
  $region7: #{fwd.11} parent=0 // loop_footer_branch
    %9 = sbr.rel target = $region3
  $region8: #{fwd.11} parent=0 // loop_exit
    _

// kernel: fwd.13
$region0: #{fwd.13}
  #allocation0 [shape = 'u32[]', space=smem, size = 0x4, offset = 0x4, fixed_abs, tag = 'smem constant byte address 0x4 - core index']
  #allocation1 [shape = 'u32[144,128]{1,0:T(1,128)}', space=vmem, size = 0x12000, scoped, tag = 'internal scratch']
  %s0 = inlined_call_operand.vmem [shape: bf16[16,96], index: 0, kind: input, shape index: {}]
  %s1 = inlined_call_operand.vmem [shape: f32[2,1,8], index: 1, kind: input, shape index: {}]
  %s2 = inlined_call_operand.vmem [shape: bf16[16,32], index: 2, kind: output, shape index: {}]
  %s3 = sld [smem:[#allocation0]]
  $region41: #{fwd.13} parent=0
    _
  %s5 = ssub.s32 1, %s3
  %s6 = scalar_select 0, %s5, %s3
  loop: start=0, step=1, limit=4
  $region2: #{fwd.13} parent=0 // loop_pre_header
    _
  $region3: #{fwd.13} parent=0 // loop_header
    %s8 = sphi 0, %s12
    %p9 = scmp.ge.s32.totalorder %s8, 4
    %s18 = sphi 0, %s20
    %s21 = sphi 0, %s18
    %s22 = sphi 0, %s21
    %s38 = sphi 0, %s22
    %s44 = sphi 0, %s46
    %s47 = sphi 0, %s44
    %s48 = sphi 0, %s47
    %s64 = sphi 0, %s48
    %s70 = sphi 0, %s72
    %s73 = sphi 0, %s70
    %s74 = sphi 0, %s73
    %s90 = sphi 0, %s74
  $region4: #{fwd.13} parent=0 // loop_header_branch
    %11 = sbr.rel (%p9) target = $region8
  $region5: #{fwd.13} parent=0 // loop_body
    %s13 = ssub.s32 %s8, 1
    %s14 = ssub.s32 %s8, 2
    %s15 = sadd.s32 %s8, 1
    %s16 = ssub.s32 %s8, %s15
    %p17 = scmp.eq.s32.totalorder %s16, 0
    %s19 = sadd.s32 %s18, 1
    %s20 = scalar_select %p17, %s18, %s19
    %p23 = pneg %p17
    %p24 = scmp.eq.s32.totalorder %s8, 1
    %p25 = por %p23, %p24
    %p26 = scmp.ne.s32.totalorder %s18, %s21
    %p27 = scmp.eq.s32.totalorder %s8, 0
    %p28 = por %p26, %p27
    %p29 = scmp.ne.s32.totalorder %s18, %s21
    %p30 = scmp.eq.s32.totalorder %s13, 1
    %p31 = por %p29, %p30
    %p32 = scmp.ne.s32.totalorder %s21, %s22
    %p33 = scmp.eq.s32.totalorder %s13, 0
    %p34 = por %p32, %p33
    %p35 = scmp.ne.s32.totalorder %s21, %s22
    %p36 = scmp.eq.s32.totalorder %s14, 1
    %p37 = por %p35, %p36
    %p39 = scmp.ne.s32.totalorder %s22, %s38
    %p40 = scmp.eq.s32.totalorder %s14, 0
    %p41 = por %p39, %p40
    %s42 = ssub.s32 %s8, %s15
    %p43 = scmp.eq.s32.totalorder %s42, 0
    %s45 = sadd.s32 %s44, 1
    %s46 = scalar_select %p43, %s44, %s45
    %p49 = pneg %p43
    %p50 = scmp.eq.s32.totalorder %s8, 1
    %p51 = por %p49, %p50
    %p52 = scmp.ne.s32.totalorder %s44, %s47
    %p53 = scmp.eq.s32.totalorder %s8, 0
    %p54 = por %p52, %p53
    %p55 = scmp.ne.s32.totalorder %s44, %s47
    %p56 = scmp.eq.s32.totalorder %s13, 1
    %p57 = por %p55, %p56
    %p58 = scmp.ne.s32.totalorder %s47, %s48
    %p59 = scmp.eq.s32.totalorder %s13, 0
    %p60 = por %p58, %p59
    %p61 = scmp.ne.s32.totalorder %s47, %s48
    %p62 = scmp.eq.s32.totalorder %s14, 1
    %p63 = por %p61, %p62
    %p65 = scmp.ne.s32.totalorder %s48, %s64
    %p66 = scmp.eq.s32.totalorder %s14, 0
    %p67 = por %p65, %p66
    %s68 = ssub.s32 %s8, %s15
    %p69 = scmp.eq.s32.totalorder %s68, 0
    %s71 = sadd.s32 %s70, 1
    %s72 = scalar_select %p69, %s70, %s71
    %p75 = pneg %p69
    %p76 = scmp.eq.s32.totalorder %s8, 1
    %p77 = por %p75, %p76
    %p78 = scmp.ne.s32.totalorder %s70, %s73
    %p79 = scmp.eq.s32.totalorder %s8, 0
    %p80 = por %p78, %p79
    %p81 = scmp.ne.s32.totalorder %s70, %s73
    %p82 = scmp.eq.s32.totalorder %s13, 1
    %p83 = por %p81, %p82
    %p84 = scmp.ne.s32.totalorder %s73, %s74
    %p85 = scmp.eq.s32.totalorder %s13, 0
    %p86 = por %p84, %p85
    %p87 = scmp.ne.s32.totalorder %s73, %s74
    %p88 = scmp.eq.s32.totalorder %s14, 1
    %p89 = por %p87, %p88
    %p91 = scmp.ne.s32.totalorder %s74, %s90
    %p92 = scmp.eq.s32.totalorder %s14, 0
    %p93 = por %p91, %p92
    %p94 = scmp.le.s32.totalorder 1, %s8
    %p95 = scmp.lt.s32.totalorder %s8, 3
    %p96 = pnand %p94, %p95
    %p97 = pneg %p96
    // Predicated region
    $region9: #{fwd.13} parent=5 // pred_check
      _
    $region10: #{fwd.13} parent=5 // pred_check_branch
      %99 = sbr.rel (%p96) target = $region12
    $region11: #{fwd.13} parent=5 // pred_region
      %s100 = ssub.s32 %s8, 1
    $region12: #{fwd.13} parent=5 // pred_fallthru
      _
    %p101 = scmp.lt.s32.totalorder %s8, 2
    // Predicated region
    $region13: #{fwd.13} parent=5 // pred_check
      %p102 = pneg %p101
    $region14: #{fwd.13} parent=5 // pred_check_branch
      %104 = sbr.rel (%p102) target = $region16
    $region15: #{fwd.13} parent=5 // pred_region
      // Predicated region
      $region17: #{fwd.13} parent=15 // pred_check
        %p105 = pneg %p28
      $region18: #{fwd.13} parent=15 // pred_check_branch
        %107 = sbr.rel (%p105) target = $region20
      $region19: #{fwd.13} parent=15 // pred_region
        %p108 = scmp.lt.s32.totalorder %s8, 1
        %s109 = scalar_select %p108, %s8, 1
        %s110 = smul.addr %s109, 4
        %s111 = scalar_lea.vmem %s0, %s110
      $region20: #{fwd.13} parent=15 // pred_fallthru
        _
      // Predicated region
      $region21: #{fwd.13} parent=15 // pred_check
        %p112 = pneg %p54
      $region22: #{fwd.13} parent=15 // pred_check_branch
        %114 = sbr.rel (%p112) target = $region24
      $region23: #{fwd.13} parent=15 // pred_region
        %p115 = scmp.lt.s32.totalorder %s8, 1
        %s116 = scalar_select %p115, %s8, 1
        %s117 = scalar_lea.vmem %s1, %s116
      $region24: #{fwd.13} parent=15 // pred_fallthru
        _
    $region16: #{fwd.13} parent=5 // pred_fallthru
      _
    %p118 = scmp.le.s32.totalorder 1, %s8
    %p119 = scmp.lt.s32.totalorder %s8, 3
    %p120 = pnand %p118, %p119
    %p121 = pneg %p120
    // Predicated region
    $region25: #{fwd.13} parent=5 // pred_check
      _
    $region26: #{fwd.13} parent=5 // pred_check_branch
      %123 = sbr.rel (%p120) target = $region28
    $region27: #{fwd.13} parent=5 // pred_region
      %s124 = ssub.s32 %s8, 1
      %p125 = scmp.lt.s32.totalorder %s13, 1
      %s126 = scalar_select %p125, %s13, 1
      %s127 = smul.addr %s126, 4
      %s128 = scalar_lea.vmem %s0, %s127
      %p129 = pneg %p34
      %p130 = pneg %p31
      %p131 = scmp.lt.s32.totalorder %s13, 1
      %s132 = scalar_select %p131, %s13, 1
      %s133 = scalar_lea.vmem %s1, %s132
      %p134 = pneg %p60
      %p135 = pneg %p57
      %p136 = pneg %p86
      %p137 = pneg %p83
      %p138 = scmp.lt.s32.totalorder %s13, 1
      %s139 = scalar_select %p138, %s13, 1
      %s140 = smul.addr %s139, 4
      %s141 = scalar_lea.vmem %s2, %s140
      %p142 = scmp.lt.s32.totalorder %s13, 1
      %s143 = scalar_select %p142, %s13, 1
      %s144 = smul.addr %s143, 4
      %s145 = scalar_lea.vmem %s0, %s144
      %p146 = scmp.lt.s32.totalorder %s13, 1
      %s147 = scalar_select %p146, %s13, 1
      %s148 = scalar_lea.vmem %s1, %s147
      %p149 = scmp.lt.s32.totalorder %s13, 1
      %s150 = scalar_select %p149, %s13, 1
      %s151 = smul.addr %s150, 4
      %s152 = scalar_lea.vmem %s2, %s151
      %v154 = vld [vmem:[%s145] sm:$0xf]
      %v155 = vld [vmem:[%s148] sm:$0x1]
      %v157 = vunpack.c.l.b16 %v154
      %v158 = vpack.c.b16 %v157, %v157
      %159 = vrot.lane.b32.xlu0 %v158, 96
      %v160 = vpop.permute.xlu0 %159
      %vm161 = vcmask 64512
      %v163 = vsel %vm161, %v154, 0
      %v166 = vsel %vm161, %v160, 0
      %168 = vmatprep.subr.bf16.mxu0 0
      %169 = vmatpush1.bf16.xpose.msra.mxu0 %v166
      %170 = vmatprep.subr.bf16.mxu0 0
      %171 = vmatpush1.bf16.xpose.msra.mxu0 0
      %172 = vmatprep.subr.bf16.mxu0 0
      %173 = vmatpush1.bf16.xpose.msra.mxu0 0
      %174 = vmatprep.subr.bf16.mxu0 0
      %175 = vmatpush1.bf16.xpose.msra.mxu0 0
      %176 = vmatprep.subr.bf16.mxu0 0
      %177 = vmatpush1.bf16.xpose.msra.mxu0 0
      %178 = vmatprep.subr.bf16.mxu0 0
      %179 = vmatpush1.bf16.xpose.msra.mxu0 0
      %180 = vmatprep.subr.bf16.mxu0 0
      %181 = vmatpush1.bf16.xpose.msra.mxu0 0
      %182 = vmatprep.subr.bf16.mxu0 0
      %183 = vmatpush1.bf16.xpose.msra.mxu0 0
      %184 = vmatprep.subr.bf16.mxu0 0
      %185 = vmatpush1.bf16.xpose.msra.mxu0 0
      %186 = vmatprep.subr.bf16.mxu0 0
      %187 = vmatpush1.bf16.xpose.msra.mxu0 0
      %188 = vmatprep.subr.bf16.mxu0 0
      %189 = vmatpush1.bf16.xpose.msra.mxu0 0
      %190 = vmatprep.subr.bf16.mxu0 0
      %191 = vmatpush1.bf16.xpose.msra.mxu0 0
      %192 = vmatprep.subr.bf16.mxu0 0
      %193 = vmatpush1.bf16.xpose.msra.mxu0 0
      %194 = vmatprep.subr.bf16.mxu0 0
      %195 = vmatpush1.bf16.xpose.msra.mxu0 0
      %196 = vmatprep.subr.bf16.mxu0 0
      %197 = vmatpush1.bf16.xpose.msra.mxu0 0
      %198 = vmatprep.subr.bf16.mxu0 0
      %199 = vmatpush1.bf16.xpose.msra.mxu0 0
      %200 = vmatprep.mubr.bf16.mxu0 0
      %201 = vmatmul.mubr.bf16.gmra.mrb[0].mxu0 %v163
      %v202 = vpop.f32.mrb[0].mxu0
      %v203 = vadd.f32 0.0, %v202
      %v204 = vpop.f32.mrb[0].mxu0
      %v205 = vpop.f32.mrb[0].mxu0
      %v206 = vpop.f32.mrb[0].mxu0
      %207 = vdwg.mxu0
      %v208 = vmul.f32 %v203, 0.35355338
      %vm209 = vcmp.gt.f32.partialorder %v155, 0.0
      %v210 = vsel %vm209, 1, 0
      %v211 = vlaneseq
      %v212 = vshrl.u32 %v211, 7
      %v213 = vsub.s32 0, %v212
      %v214 = vrot.slane %v210, %v213
      %vm215 = vcmp.eq.s32.totalorder %v214, 1
      %v216 = vsel %vm215, %v208, -1e+09
      %v217 = vsel %vm161, %v216, -inf
      %218 = vmax.xlane.f32.xlu0 %v217
      %v219 = vpop.xlane.xlu0 %218
      %v220 = vsub.f32 %v216, %v219
      %v221 = vmul.f32 %v220, 1.442695
      %v222 = vpow.pop %v221
      %v223 = vsel %vm161, %v222, 0.0
      %224 = vadd.xlane.f32.xlu0 %v223
      %v225 = vpop.xlane.xlu0 %224
      %v226 = vrcp.pop %v225
      %v227 = vmul.f32 %v222, %v226
      %v228 = vpack.c.bf16 %v227, %v227
      %229 = vrot.lane.b32.xlu0 %v158, 64
      %v230 = vpop.permute.xlu0 %229
      %v232 = vsel %vm161, %v228, 0
      %vm234 = vcmask 1043456
      %v236 = vsel %vm234, %v230, 0
      %238 = vmatprep.subr.bf16.mxu0 0
      %239 = vmatpush1.bf16.msra.mxu0 %v236
      %240 = vmatprep.subr.bf16.mxu0 0
      %241 = vmatpush1.bf16.msra.mxu0 0
      %242 = vmatprep.subr.bf16.mxu0 0
      %243 = vmatpush1.bf16.msra.mxu0 0
      %244 = vmatprep.subr.bf16.mxu0 0
      %245 = vmatpush1.bf16.msra.mxu0 0
      %246 = vmatprep.subr.bf16.mxu0 0
      %247 = vmatpush1.bf16.msra.mxu0 0
      %248 = vmatprep.subr.bf16.mxu0 0
      %249 = vmatpush1.bf16.msra.mxu0 0
      %250 = vmatprep.subr.bf16.mxu0 0
      %251 = vmatpush1.bf16.msra.mxu0 0
      %252 = vmatprep.subr.bf16.mxu0 0
      %253 = vmatpush1.bf16.msra.mxu0 0
      %254 = vmatprep.subr.bf16.mxu0 0
      %255 = vmatpush1.bf16.msra.mxu0 0
      %256 = vmatprep.subr.bf16.mxu0 0
      %257 = vmatpush1.bf16.msra.mxu0 0
      %258 = vmatprep.subr.bf16.mxu0 0
      %259 = vmatpush1.bf16.msra.mxu0 0
      %260 = vmatprep.subr.bf16.mxu0 0
      %261 = vmatpush1.bf16.msra.mxu0 0
      %262 = vmatprep.subr.bf16.mxu0 0
      %263 = vmatpush1.bf16.msra.mxu0 0
      %264 = vmatprep.subr.bf16.mxu0 0
      %265 = vmatpush1.bf16.msra.mxu0 0
      %266 = vmatprep.subr.bf16.mxu0 0
      %267 = vmatpush1.bf16.msra.mxu0 0
      %268 = vmatprep.subr.bf16.mxu0 0
      %269 = vmatpush1.bf16.msra.mxu0 0
      %270 = vmatprep.mubr.bf16.mxu0 0
      %271 = vmatmul.mubr.bf16.gmra.mrb[0].mxu0 %v232
      %v272 = vpop.f32.mrb[0].mxu0
      %v273 = vadd.f32 0.0, %v272
      %v274 = vpop.f32.mrb[0].mxu0
      %v275 = vpop.f32.mrb[0].mxu0
      %v276 = vpop.f32.mrb[0].mxu0
      %277 = vdwg.mxu0
      %v278 = vpack.c.bf16 %v273, %v273
      %vm279 = vcmask 60416
      %280 = vst.msk [vmem:[%s152] sm:$0xf] %vm279, %v278
      %281 = vrot.lane.b32.xlu0 %v158, 120
      %v282 = vpop.permute.xlu0 %281
      %283 = vrot.lane.b32.xlu0 %v158, 88
      %v284 = vpop.permute.xlu0 %283
      %v286 = vsel %vm161, %v282, 0
      %v289 = vsel %vm161, %v284, 0
      %291 = vmatprep.subr.bf16.mxu0 0
      %292 = vmatpush1.bf16.xpose.msra.mxu0 %v289
      %293 = vmatprep.subr.bf16.mxu0 0
      %294 = vmatpush1.bf16.xpose.msra.mxu0 0
      %295 = vmatprep.subr.bf16.mxu0 0
      %296 = vmatpush1.bf16.xpose.msra.mxu0 0
      %297 = vmatprep.subr.bf16.mxu0 0
      %298 = vmatpush1.bf16.xpose.msra.mxu0 0
      %299 = vmatprep.subr.bf16.mxu0 0
      %300 = vmatpush1.bf16.xpose.msra.mxu0 0
      %301 = vmatprep.subr.bf16.mxu0 0
      %302 = vmatpush1.bf16.xpose.msra.mxu0 0
      %303 = vmatprep.subr.bf16.mxu0 0
      %304 = vmatpush1.bf16.xpose.msra.mxu0 0
      %305 = vmatprep.subr.bf16.mxu0 0
      %306 = vmatpush1.bf16.xpose.msra.mxu0 0
      %307 = vmatprep.subr.bf16.mxu0 0
      %308 = vmatpush1.bf16.xpose.msra.mxu0 0
      %309 = vmatprep.subr.bf16.mxu0 0
      %310 = vmatpush1.bf16.xpose.msra.mxu0 0
      %311 = vmatprep.subr.bf16.mxu0 0
      %312 = vmatpush1.bf16.xpose.msra.mxu0 0
      %313 = vmatprep.subr.bf16.mxu0 0
      %314 = vmatpush1.bf16.xpose.msra.mxu0 0
      %315 = vmatprep.subr.bf16.mxu0 0
      %316 = vmatpush1.bf16.xpose.msra.mxu0 0
      %317 = vmatprep.subr.bf16.mxu0 0
      %318 = vmatpush1.bf16.xpose.msra.mxu0 0
      %319 = vmatprep.subr.bf16.mxu0 0
      %320 = vmatpush1.bf16.xpose.msra.mxu0 0
      %321 = vmatprep.subr.bf16.mxu0 0
      %322 = vmatpush1.bf16.xpose.msra.mxu0 0
      %323 = vmatprep.mubr.bf16.mxu0 0
      %324 = vmatmul.mubr.bf16.gmra.mrb[0].mxu0 %v286
      %v325 = vpop.f32.mrb[0].mxu0
      %v326 = vadd.f32 0.0, %v325
      %v327 = vpop.f32.mrb[0].mxu0
      %v328 = vpop.f32.mrb[0].mxu0
      %v329 = vpop.f32.mrb[0].mxu0
      %330 = vdwg.mxu0
      %v331 = vmul.f32 %v326, 0.35355338
      %v332 = vsel %vm215, %v331, -1e+09
      %v333 = vsel %vm161, %v332, -inf
      %334 = vmax.xlane.f32.xlu0 %v333
      %v335 = vpop.xlane.xlu0 %334
      %v336 = vsub.f32 %v332, %v335
      %v337 = vmul.f32 %v336, 1.442695
      %v338 = vpow.pop %v337
      %v339 = vsel %vm161, %v338, 0.0
      %340 = vadd.xlane.f32.xlu0 %v339
      %v341 = vpop.xlane.xlu0 %340
      %v342 = vrcp.pop %v341
      %v343 = vmul.f32 %v338, %v342
      %v344 = vpack.c.bf16 %v343, %v343
      %345 = vrot.lane.b32.xlu0 %v158, 56
      %v346 = vpop.permute.xlu0 %345
      %v348 = vsel %vm161, %v344, 0
      %v351 = vsel %vm234, %v346, 0
      %353 = vmatprep.subr.bf16.mxu0 0
      %354 = vmatpush1.bf16.msra.mxu0 %v351
      %355 = vmatprep.subr.bf16.mxu0 0
      %356 = vmatpush1.bf16.msra.mxu0 0
      %357 = vmatprep.subr.bf16.mxu0 0
      %358 = vmatpush1.bf16.msra.mxu0 0
      %359 = vmatprep.subr.bf16.mxu0 0
      %360 = vmatpush1.bf16.msra.mxu0 0
      %361 = vmatprep.subr.bf16.mxu0 0
      %362 = vmatpush1.bf16.msra.mxu0 0
      %363 = vmatprep.subr.bf16.mxu0 0
      %364 = vmatpush1.bf16.msra.mxu0 0
      %365 = vmatprep.subr.bf16.mxu0 0
      %366 = vmatpush1.bf16.msra.mxu0 0
      %367 = vmatprep.subr.bf16.mxu0 0
      %368 = vmatpush1.bf16.msra.mxu0 0
      %369 = vmatprep.subr.bf16.mxu0 0
      %370 = vmatpush1.bf16.msra.mxu0 0
      %371 = vmatprep.subr.bf16.mxu0 0
      %372 = vmatpush1.bf16.msra.mxu0 0
      %373 = vmatprep.subr.bf16.mxu0 0
      %374 = vmatpush1.bf16.msra.mxu0 0
      %375 = vmatprep.subr.bf16.mxu0 0
      %376 = vmatpush1.bf16.msra.mxu0 0
      %377 = vmatprep.subr.bf16.mxu0 0
      %378 = vmatpush1.bf16.msra.mxu0 0
      %379 = vmatprep.subr.bf16.mxu0 0
      %380 = vmatpush1.bf16.msra.mxu0 0
      %381 = vmatprep.subr.bf16.mxu0 0
      %382 = vmatpush1.bf16.msra.mxu0 0
      %383 = vmatprep.subr.bf16.mxu0 0
      %384 = vmatpush1.bf16.msra.mxu0 0
      %385 = vmatprep.mubr.bf16.mxu0 0
      %386 = vmatmul.mubr.bf16.gmra.mrb[0].mxu0 %v348
      %v387 = vpop.f32.mrb[0].mxu0
      %v388 = vadd.f32 0.0, %v387
      %v389 = vpop.f32.mrb[0].mxu0
      %v390 = vpop.f32.mrb[0].mxu0
      %v391 = vpop.f32.mrb[0].mxu0
      %392 = vdwg.mxu0
      %v393 = vpack.c.bf16 %v388, %v388
      %v395 = vunpack.c.l.b16 %v393
      %v396 = vpack.c.b16 %v395, %v395
      %397 = vrot.lane.b32.xlu0 %v396, 8
      %v398 = vpop.permute.xlu0 %397
      %vm400 = vcmask 126016
      %401 = vst.msk [vmem:[%s152] sm:$0xf] %vm400, %v398
      %402 = vrot.lane.b32.xlu0 %v158, 112
      %v403 = vpop.permute.xlu0 %402
      %404 = vrot.lane.b32.xlu0 %v158, 80
      %v405 = vpop.permute.xlu0 %404
      %v407 = vsel %vm161, %v403, 0
      %v410 = vsel %vm161, %v405, 0
      %412 = vmatprep.subr.bf16.mxu0 0
      %413 = vmatpush1.bf16.xpose.msra.mxu0 %v410
      %414 = vmatprep.subr.bf16.mxu0 0
      %415 = vmatpush1.bf16.xpose.msra.mxu0 0
      %416 = vmatprep.subr.bf16.mxu0 0
      %417 = vmatpush1.bf16.xpose.msra.mxu0 0
      %418 = vmatprep.subr.bf16.mxu0 0
      %419 = vmatpush1.bf16.xpose.msra.mxu0 0
      %420 = vmatprep.subr.bf16.mxu0 0
      %421 = vmatpush1.bf16.xpose.msra.mxu0 0
      %422 = vmatprep.subr.bf16.mxu0 0
      %423 = vmatpush1.bf16.xpose.msra.mxu0 0
      %424 = vmatprep.subr.bf16.mxu0 0
      %425 = vmatpush1.bf16.xpose.msra.mxu0 0
      %426 = vmatprep.subr.bf16.mxu0 0
      %427 = vmatpush1.bf16.xpose.msra.mxu0 0
      %428 = vmatprep.subr.bf16.mxu0 0
      %429 = vmatpush1.bf16.xpose.msra.mxu0 0
      %430 = vmatprep.subr.bf16.mxu0 0
      %431 = vmatpush1.bf16.xpose.msra.mxu0 0
      %432 = vmatprep.subr.bf16.mxu0 0
      %433 = vmatpush1.bf16.xpose.msra.mxu0 0
      %434 = vmatprep.subr.bf16.mxu0 0
      %435 = vmatpush1.bf16.xpose.msra.mxu0 0
      %436 = vmatprep.subr.bf16.mxu0 0
      %437 = vmatpush1.bf16.xpose.msra.mxu0 0
      %438 = vmatprep.subr.bf16.mxu0 0
      %439 = vmatpush1.bf16.xpose.msra.mxu0 0
      %440 = vmatprep.subr.bf16.mxu0 0
      %441 = vmatpush1.bf16.xpose.msra.mxu0 0
      %442 = vmatprep.subr.bf16.mxu0 0
      %443 = vmatpush1.bf16.xpose.msra.mxu0 0
      %444 = vmatprep.mubr.bf16.mxu0 0
      %445 = vmatmul.mubr.bf16.gmra.mrb[0].mxu0 %v407
      %v446 = vpop.f32.mrb[0].mxu0
      %v447 = vadd.f32 0.0, %v446
      %v448 = vpop.f32.mrb[0].mxu0
      %v449 = vpop.f32.mrb[0].mxu0
      %v450 = vpop.f32.mrb[0].mxu0
      %451 = vdwg.mxu0
      %v452 = vmul.f32 %v447, 0.35355338
      %v453 = vsel %vm215, %v452, -1e+09
      %v454 = vsel %vm161, %v453, -inf
      %455 = vmax.xlane.f32.xlu0 %v454
      %v456 = vpop.xlane.xlu0 %455
      %v457 = vsub.f32 %v453, %v456
      %v458 = vmul.f32 %v457, 1.442695
      %v459 = vpow.pop %v458
      %v460 = vsel %vm161, %v459, 0.0
      %461 = vadd.xlane.f32.xlu0 %v460
      %v462 = vpop.xlane.xlu0 %461
      %v463 = vrcp.pop %v462
      %v464 = vmul.f32 %v459, %v463
      %v465 = vpack.c.bf16 %v464, %v464
      %466 = vrot.lane.b32.xlu0 %v158, 48
      %v467 = vpop.permute.xlu0 %466
      %v469 = vsel %vm161, %v465, 0
      %v472 = vsel %vm234, %v467, 0
      %474 = vmatprep.subr.bf16.mxu0 0
      %475 = vmatpush1.bf16.msra.mxu0 %v472
      %476 = vmatprep.subr.bf16.mxu0 0
      %477 = vmatpush1.bf16.msra.mxu0 0
      %478 = vmatprep.subr.bf16.mxu0 0
      %479 = vmatpush1.bf16.msra.mxu0 0
      %480 = vmatprep.subr.bf16.mxu0 0
      %481 = vmatpush1.bf16.msra.mxu0 0
      %482 = vmatprep.subr.bf16.mxu0 0
      %483 = vmatpush1.bf16.msra.mxu0 0
      %484 = vmatprep.subr.bf16.mxu0 0
      %485 = vmatpush1.bf16.msra.mxu0 0
      %486 = vmatprep.subr.bf16.mxu0 0
      %487 = vmatpush1.bf16.msra.mxu0 0
      %488 = vmatprep.subr.bf16.mxu0 0
      %489 = vmatpush1.bf16.msra.mxu0 0
      %490 = vmatprep.subr.bf16.mxu0 0
      %491 = vmatpush1.bf16.msra.mxu0 0
      %492 = vmatprep.subr.bf16.mxu0 0
      %493 = vmatpush1.bf16.msra.mxu0 0
      %494 = vmatprep.subr.bf16.mxu0 0
      %495 = vmatpush1.bf16.msra.mxu0 0
      %496 = vmatprep.subr.bf16.mxu0 0
      %497 = vmatpush1.bf16.msra.mxu0 0
      %498 = vmatprep.subr.bf16.mxu0 0
      %499 = vmatpush1.bf16.msra.mxu0 0
      %500 = vmatprep.subr.bf16.mxu0 0
      %501 = vmatpush1.bf16.msra.mxu0 0
      %502 = vmatprep.subr.bf16.mxu0 0
      %503 = vmatpush1.bf16.msra.mxu0 0
      %504 = vmatprep.subr.bf16.mxu0 0
      %505 = vmatpush1.bf16.msra.mxu0 0
      %506 = vmatprep.mubr.bf16.mxu0 0
      %507 = vmatmul.mubr.bf16.gmra.mrb[0].mxu0 %v469
      %v508 = vpop.f32.mrb[0].mxu0
      %v509 = vadd.f32 0.0, %v508
      %v510 = vpop.f32.mrb[0].mxu0
      %v511 = vpop.f32.mrb[0].mxu0
      %v512 = vpop.f32.mrb[0].mxu0
      %513 = vdwg.mxu0
      %v514 = vpack.c.bf16 %v509, %v509
      %v516 = vunpack.c.l.b16 %v514
      %v517 = vpack.c.b16 %v516, %v516
      %518 = vrot.lane.b32.xlu0 %v517, 16
      %v519 = vpop.permute.xlu0 %518
      %vm521 = vcmask 191616
      %522 = vst.msk [vmem:[%s152] sm:$0xf] %vm521, %v519
      %523 = vrot.lane.b32.xlu0 %v158, 104
      %v524 = vpop.permute.xlu0 %523
      %525 = vrot.lane.b32.xlu0 %v158, 72
      %v526 = vpop.permute.xlu0 %525
      %v528 = vsel %vm161, %v524, 0
      %v531 = vsel %vm161, %v526, 0
      %533 = vmatprep.subr.bf16.mxu0 0
      %534 = vmatpush1.bf16.xpose.msra.mxu0 %v531
      %535 = vmatprep.subr.bf16.mxu0 0
      %536 = vmatpush1.bf16.xpose.msra.mxu0 0
      %537 = vmatprep.subr.bf16.mxu0 0
      %538 = vmatpush1.bf16.xpose.msra.mxu0 0
      %539 = vmatprep.subr.bf16.mxu0 0
      %540 = vmatpush1.bf16.xpose.msra.mxu0 0
      %541 = vmatprep.subr.bf16.mxu0 0
      %542 = vmatpush1.bf16.xpose.msra.mxu0 0
      %543 = vmatprep.subr.bf16.mxu0 0
      %544 = vmatpush1.bf16.xpose.msra.mxu0 0
      %545 = vmatprep.subr.bf16.mxu0 0
      %546 = vmatpush1.bf16.xpose.msra.mxu0 0
      %547 = vmatprep.subr.bf16.mxu0 0
      %548 = vmatpush1.bf16.xpose.msra.mxu0 0
      %549 = vmatprep.subr.bf16.mxu0 0
      %550 = vmatpush1.bf16.xpose.msra.mxu0 0
      %551 = vmatprep.subr.bf16.mxu0 0
      %552 = vmatpush1.bf16.xpose.msra.mxu0 0
      %553 = vmatprep.subr.bf16.mxu0 0
      %554 = vmatpush1.bf16.xpose.msra.mxu0 0
      %555 = vmatprep.subr.bf16.mxu0 0
      %556 = vmatpush1.bf16.xpose.msra.mxu0 0
      %557 = vmatprep.subr.bf16.mxu0 0
      %558 = vmatpush1.bf16.xpose.msra.mxu0 0
      %559 = vmatprep.subr.bf16.mxu0 0
      %560 = vmatpush1.bf16.xpose.msra.mxu0 0
      %561 = vmatprep.subr.bf16.mxu0 0
      %562 = vmatpush1.bf16.xpose.msra.mxu0 0
      %563 = vmatprep.subr.bf16.mxu0 0
      %564 = vmatpush1.bf16.xpose.msra.mxu0 0
      %565 = vmatprep.mubr.bf16.mxu0 0
      %566 = vmatmul.mubr.bf16.gmra.mrb[0].mxu0 %v528
      %v567 = vpop.f32.mrb[0].mxu0
      %v568 = vadd.f32 0.0, %v567
      %v569 = vpop.f32.mrb[0].mxu0
      %v570 = vpop.f32.mrb[0].mxu0
      %v571 = vpop.f32.mrb[0].mxu0
      %572 = vdwg.mxu0
      %v573 = vmul.f32 %v568, 0.35355338
      %v574 = vsel %vm215, %v573, -1e+09
      %v575 = vsel %vm161, %v574, -inf
      %576 = vmax.xlane.f32.xlu0 %v575
      %v577 = vpop.xlane.xlu0 %576
      %v578 = vsub.f32 %v574, %v577
      %v579 = vmul.f32 %v578, 1.442695
      %v580 = vpow.pop %v579
      %v581 = vsel %vm161, %v580, 0.0
      %582 = vadd.xlane.f32.xlu0 %v581
      %v583 = vpop.xlane.xlu0 %582
      %v584 = vrcp.pop %v583
      %v585 = vmul.f32 %v580, %v584
      %v586 = vpack.c.bf16 %v585, %v585
      %587 = vrot.lane.b32.xlu0 %v158, 40
      %v588 = vpop.permute.xlu0 %587
      %v590 = vsel %vm161, %v586, 0
      %v593 = vsel %vm234, %v588, 0
      %595 = vmatprep.subr.bf16.mxu0 0
      %596 = vmatpush1.bf16.msra.mxu0 %v593
      %597 = vmatprep.subr.bf16.mxu0 0
      %598 = vmatpush1.bf16.msra.mxu0 0
      %599 = vmatprep.subr.bf16.mxu0 0
      %600 = vmatpush1.bf16.msra.mxu0 0
      %601 = vmatprep.subr.bf16.mxu0 0
      %602 = vmatpush1.bf16.msra.mxu0 0
      %603 = vmatprep.subr.bf16.mxu0 0
      %604 = vmatpush1.bf16.msra.mxu0 0
      %605 = vmatprep.subr.bf16.mxu0 0
      %606 = vmatpush1.bf16.msra.mxu0 0
      %607 = vmatprep.subr.bf16.mxu0 0
      %608 = vmatpush1.bf16.msra.mxu0 0
      %609 = vmatprep.subr.bf16.mxu0 0
      %610 = vmatpush1.bf16.msra.mxu0 0
      %611 = vmatprep.subr.bf16.mxu0 0
      %612 = vmatpush1.bf16.msra.mxu0 0
      %613 = vmatprep.subr.bf16.mxu0 0
      %614 = vmatpush1.bf16.msra.mxu0 0
      %615 = vmatprep.subr.bf16.mxu0 0
      %616 = vmatpush1.bf16.msra.mxu0 0
      %617 = vmatprep.subr.bf16.mxu0 0
      %618 = vmatpush1.bf16.msra.mxu0 0
      %619 = vmatprep.subr.bf16.mxu0 0
      %620 = vmatpush1.bf16.msra.mxu0 0
      %621 = vmatprep.subr.bf16.mxu0 0
      %622 = vmatpush1.bf16.msra.mxu0 0
      %623 = vmatprep.subr.bf16.mxu0 0
      %624 = vmatpush1.bf16.msra.mxu0 0
      %625 = vmatprep.subr.bf16.mxu0 0
      %626 = vmatpush1.bf16.msra.mxu0 0
      %627 = vmatprep.mubr.bf16.mxu0 0
      %628 = vmatmul.mubr.bf16.gmra.mrb[0].mxu0 %v590
      %v629 = vpop.f32.mrb[0].mxu0
      %v630 = vadd.f32 0.0, %v629
      %v631 = vpop.f32.mrb[0].mxu0
      %v632 = vpop.f32.mrb[0].mxu0
      %v633 = vpop.f32.mrb[0].mxu0
      %634 = vdwg.mxu0
      %v635 = vpack.c.bf16 %v630, %v630
      %v637 = vunpack.c.l.b16 %v635
      %v638 = vpack.c.b16 %v637, %v637
      %639 = vrot.lane.b32.xlu0 %v638, 24
      %v640 = vpop.permute.xlu0 %639
      %vm642 = vcmask 257216
      %643 = vst.msk [vmem:[%s152] sm:$0xf] %vm642, %v640
      %p644 = scmp.lt.s32.totalorder %s13, 1
      %s645 = scalar_select %p644, %s13, 1
      %s646 = smul.addr %s645, 4
      %s647 = scalar_lea.vmem %s2, %s646
      // Predicated region
      $region29: #{fwd.13} parent=27 // pred_check
        %p648 = pneg %p83
      $region30: #{fwd.13} parent=27 // pred_check_branch
        %650 = sbr.rel (%p648) target = $region32
      $region31: #{fwd.13} parent=27 // pred_region
        _
      $region32: #{fwd.13} parent=27 // pred_fallthru
        _
    $region28: #{fwd.13} parent=5 // pred_fallthru
      _
    %p651 = scmp.le.s32.totalorder 2, %s8
    // Predicated region
    $region33: #{fwd.13} parent=5 // pred_check
      %p652 = pneg %p651
    $region34: #{fwd.13} parent=5 // pred_check_branch
      %654 = sbr.rel (%p652) target = $region36
    $region35: #{fwd.13} parent=5 // pred_region
      %s655 = ssub.s32 %s8, 2
      // Predicated region
      $region37: #{fwd.13} parent=35 // pred_check
        %p656 = pneg %p89
      $region38: #{fwd.13} parent=35 // pred_check_branch
        %658 = sbr.rel (%p656) target = $region40
      $region39: #{fwd.13} parent=35 // pred_region
        %p659 = scmp.lt.s32.totalorder %s14, 1
        %s660 = scalar_select %p659, %s14, 1
        %s661 = smul.addr %s660, 4
        %s662 = scalar_lea.vmem %s2, %s661
      $region40: #{fwd.13} parent=35 // pred_fallthru
        _
    $region36: #{fwd.13} parent=5 // pred_fallthru
      _
  $region6: #{fwd.13} parent=0 // loop_footer
    %s12 = sadd.s32 1, %s8
  $region7: #{fwd.13} parent=0 // loop_footer_branch
    %7 = sbr.rel target = $region3
  $region8: #{fwd.13} parent=0 // loop_exit
    _

// kernel: fwd.15
$region0: #{fwd.15}
  #allocation0 [shape = 'u32[]', space=smem, size = 0x4, offset = 0x4, fixed_abs, tag = 'smem constant byte address 0x4 - core index']
  #allocation1 [shape = 'u32[144,128]{1,0:T(1,128)}', space=vmem, size = 0x12000, scoped, tag = 'internal scratch']
  %s0 = inlined_call_operand.vmem [shape: bf16[16,32], index: 0, kind: input, shape index: {}]
  %s1 = inlined_call_operand.vmem [shape: bf16[32,64], index: 1, kind: input, shape index: {}]
  %s2 = inlined_call_operand.vmem [shape: f32[1,64], index: 2, kind: input, shape index: {}]
  %s3 = inlined_call_operand.vmem [shape: bf16[16,64], index: 3, kind: output, shape index: {}]
  %s4 = sld [smem:[#allocation0]]
  $region22: #{fwd.15} parent=0
    _
  %s6 = ssub.s32 1, %s4
  %s7 = scalar_select 0, %s6, %s4
  // Predicated region
  $region2: #{fwd.15} parent=0 // pred_check
    _
  $region3: #{fwd.15} parent=0 // pred_check_branch
    %9 = sbr.rel (0) target = $region5
  $region4: #{fwd.15} parent=0 // pred_region
    _
  $region5: #{fwd.15} parent=0 // pred_fallthru
    _
  // Predicated region
  $region6: #{fwd.15} parent=0 // pred_check
    _
  $region7: #{fwd.15} parent=0 // pred_check_branch
    %11 = sbr.rel (0) target = $region9
  $region8: #{fwd.15} parent=0 // pred_region
    _
  $region9: #{fwd.15} parent=0 // pred_fallthru
    _
  // Predicated region
  $region10: #{fwd.15} parent=0 // pred_check
    _
  $region11: #{fwd.15} parent=0 // pred_check_branch
    %13 = sbr.rel (0) target = $region13
  $region12: #{fwd.15} parent=0 // pred_region
    _
  $region13: #{fwd.15} parent=0 // pred_fallthru
    _
  %v15 = vld [vmem:[%s0] sm:$0xf]
  %v16 = vld [vmem:[%s0 + $0x4] sm:$0xf]
  %v17 = vld [vmem:[%s1] sm:$0xf]
  %v18 = vld [vmem:[%s1 + $0x4] sm:$0xf]
  %v19 = vld [vmem:[%s1 + $0x8] sm:$0xf]
  %v20 = vld [vmem:[%s1 + $0xc] sm:$0xf]
  %v21 = vld [vmem:[%s2] sm:$0x1]
  %v23 = vlaneseq
  %v24 = vshrl.u32 %v23, 7
  %v25 = vsub.s32 0, %v24
  %v26 = vrot.slane %v21, %v25
  %v30 = vunpack.c.l.b16 %v15
  %v31 = vunpack.c.l.b16 %v16
  %v32 = vpack.c.b16 %v31, %v30
  %v37 = vunpack.c.l.b16 %v17
  %v38 = vunpack.c.l.b16 %v18
  %v39 = vunpack.c.l.b16 %v19
  %v40 = vunpack.c.l.b16 %v20
  %v41 = vpack.c.b16 %v38, %v37
  %v42 = vpack.c.b16 %v40, %v39
  %vm45 = vcmask 261120
  %v47 = vsel %vm45, %v32, 0
  %49 = vmatprep.subr.bf16.mxu0 0
  %50 = vmatpush1.bf16.msra.mxu0 %v41
  %51 = vmatprep.subr.bf16.mxu0 0
  %52 = vmatpush1.bf16.msra.mxu0 %v42
  %53 = vmatprep.subr.bf16.mxu0 0
  %54 = vmatpush1.bf16.msra.mxu0 0
  %55 = vmatprep.subr.bf16.mxu0 0
  %56 = vmatpush1.bf16.msra.mxu0 0
  %57 = vmatprep.subr.bf16.mxu0 0
  %58 = vmatpush1.bf16.msra.mxu0 0
  %59 = vmatprep.subr.bf16.mxu0 0
  %60 = vmatpush1.bf16.msra.mxu0 0
  %61 = vmatprep.subr.bf16.mxu0 0
  %62 = vmatpush1.bf16.msra.mxu0 0
  %63 = vmatprep.subr.bf16.mxu0 0
  %64 = vmatpush1.bf16.msra.mxu0 0
  %65 = vmatprep.subr.bf16.mxu0 0
  %66 = vmatpush1.bf16.msra.mxu0 0
  %67 = vmatprep.subr.bf16.mxu0 0
  %68 = vmatpush1.bf16.msra.mxu0 0
  %69 = vmatprep.subr.bf16.mxu0 0
  %70 = vmatpush1.bf16.msra.mxu0 0
  %71 = vmatprep.subr.bf16.mxu0 0
  %72 = vmatpush1.bf16.msra.mxu0 0
  %73 = vmatprep.subr.bf16.mxu0 0
  %74 = vmatpush1.bf16.msra.mxu0 0
  %75 = vmatprep.subr.bf16.mxu0 0
  %76 = vmatpush1.bf16.msra.mxu0 0
  %77 = vmatprep.subr.bf16.mxu0 0
  %78 = vmatpush1.bf16.msra.mxu0 0
  %79 = vmatprep.subr.bf16.mxu0 0
  %80 = vmatpush1.bf16.msra.mxu0 0
  %81 = vmatprep.mubr.bf16.mxu0 0
  %82 = vmatmul.mubr.bf16.gmra.mrb[0].mxu0 %v47
  %v83 = vpop.f32.mrb[0].mxu0
  %v84 = vadd.f32 %v26, %v83
  %v85 = vpop.f32.mrb[0].mxu0
  %v86 = vpop.f32.mrb[0].mxu0
  %v87 = vadd.f32 %v26, %v86
  %v88 = vpop.f32.mrb[0].mxu0
  %89 = vdwg.mxu0
  %v90 = vmul.f32 %v84, %v84
  %v91 = vmul.f32 %v87, %v87
  %v92 = vmul.f32 %v84, %v90
  %v93 = vmul.f32 %v87, %v91
  %v94 = vmul.f32 %v92, 0.044715
  %v95 = vmul.f32 %v93, 0.044715
  %v96 = vadd.f32 %v84, %v94
  %v97 = vadd.f32 %v87, %v95
  %v98 = vmul.f32 %v96, 0.7978846
  %v99 = vmul.f32 %v97, 0.7978846
  %v100 = vtanh.pop %v98
  %v101 = vtanh.pop %v99
  %v102 = vadd.f32 %v100, 1.0
  %v103 = vadd.f32 %v101, 1.0
  %v104 = vmul.f32 %v102, 0.5
  %v105 = vmul.f32 %v103, 0.5
  %v106 = vmul.f32 %v84, %v104
  %v107 = vmul.f32 %v87, %v105
  %v108 = vpack.c.bf16 %v107, %v106
  %v110 = vunpack.c.l.b16 %v108
  %v111 = vunpack.c.h.b16 %v108
  %v112 = vpack.c.b16 %v110, %v110
  %v113 = vpack.c.b16 %v111, %v111
  %vm116 = vcmask 519168
  %117 = vst.msk [vmem:[%s3] sm:$0xf] %vm116, %v112
  %118 = vst.msk [vmem:[%s3 + $0x4] sm:$0xf] %vm116, %v113
  // Predicated region
  $region14: #{fwd.15} parent=0 // pred_check
    _
  $region15: #{fwd.15} parent=0 // pred_check_branch
    %120 = sbr.rel (0) target = $region17
  $region16: #{fwd.15} parent=0 // pred_region
    _
  $region17: #{fwd.15} parent=0 // pred_fallthru
    _
  // Predicated region
  $region18: #{fwd.15} parent=0 // pred_check
    _
  $region19: #{fwd.15} parent=0 // pred_check_branch
    %122 = sbr.rel (0) target = $region21
  $region20: #{fwd.15} parent=0 // pred_region
    _
  $region21: #{fwd.15} parent=0 // pred_fallthru
    _

// kernel: fwd.16
$region0: #{fwd.16}
  #allocation0 [shape = 'u32[]', space=smem, size = 0x4, offset = 0x4, fixed_abs, tag = 'smem constant byte address 0x4 - core index']
  #allocation1 [shape = 'u32[144,128]{1,0:T(1,128)}', space=vmem, size = 0x12000, scoped, tag = 'internal scratch']
  %s0 = inlined_call_operand.vmem [shape: bf16[16,64], index: 0, kind: input, shape index: {}]
  %s1 = inlined_call_operand.vmem [shape: bf16[64,32], index: 1, kind: input, shape index: {}]
  %s2 = inlined_call_operand.vmem [shape: f32[1,32], index: 2, kind: input, shape index: {}]
  %s3 = inlined_call_operand.vmem [shape: bf16[16,32], index: 3, kind: input, shape index: {}]
  %s4 = inlined_call_operand.vmem [shape: f32[1,32], index: 4, kind: input, shape index: {}]
  %s5 = inlined_call_operand.vmem [shape: f32[1,32], index: 5, kind: input, shape index: {}]
  %s6 = inlined_call_operand.vmem [shape: bf16[16,32], index: 6, kind: output, shape index: {}]
  %s7 = sld [smem:[#allocation0]]
  $region34: #{fwd.16} parent=0
    _
  %s9 = ssub.s32 1, %s7
  %s10 = scalar_select 0, %s9, %s7
  // Predicated region
  $region2: #{fwd.16} parent=0 // pred_check
    _
  $region3: #{fwd.16} parent=0 // pred_check_branch
    %12 = sbr.rel (0) target = $region5
  $region4: #{fwd.16} parent=0 // pred_region
    _
  $region5: #{fwd.16} parent=0 // pred_fallthru
    _
  // Predicated region
  $region6: #{fwd.16} parent=0 // pred_check
    _
  $region7: #{fwd.16} parent=0 // pred_check_branch
    %14 = sbr.rel (0) target = $region9
  $region8: #{fwd.16} parent=0 // pred_region
    _
  $region9: #{fwd.16} parent=0 // pred_fallthru
    _
  // Predicated region
  $region10: #{fwd.16} parent=0 // pred_check
    _
  $region11: #{fwd.16} parent=0 // pred_check_branch
    %16 = sbr.rel (0) target = $region13
  $region12: #{fwd.16} parent=0 // pred_region
    _
  $region13: #{fwd.16} parent=0 // pred_fallthru
    _
  // Predicated region
  $region14: #{fwd.16} parent=0 // pred_check
    _
  $region15: #{fwd.16} parent=0 // pred_check_branch
    %18 = sbr.rel (0) target = $region17
  $region16: #{fwd.16} parent=0 // pred_region
    _
  $region17: #{fwd.16} parent=0 // pred_fallthru
    _
  // Predicated region
  $region18: #{fwd.16} parent=0 // pred_check
    _
  $region19: #{fwd.16} parent=0 // pred_check_branch
    %20 = sbr.rel (0) target = $region21
  $region20: #{fwd.16} parent=0 // pred_region
    _
  $region21: #{fwd.16} parent=0 // pred_fallthru
    _
  // Predicated region
  $region22: #{fwd.16} parent=0 // pred_check
    _
  $region23: #{fwd.16} parent=0 // pred_check_branch
    %22 = sbr.rel (0) target = $region25
  $region24: #{fwd.16} parent=0 // pred_region
    _
  $region25: #{fwd.16} parent=0 // pred_fallthru
    _
  %v24 = vld [vmem:[%s0] sm:$0xf]
  %v25 = vld [vmem:[%s0 + $0x4] sm:$0xf]
  %v26 = vld [vmem:[%s1] sm:$0xf]
  %v27 = vld [vmem:[%s1 + $0x4] sm:$0xf]
  %v28 = vld [vmem:[%s1 + $0x8] sm:$0xf]
  %v29 = vld [vmem:[%s1 + $0xc] sm:$0xf]
  %v30 = vld [vmem:[%s1 + $0x10] sm:$0xf]
  %v31 = vld [vmem:[%s1 + $0x14] sm:$0xf]
  %v32 = vld [vmem:[%s1 + $0x18] sm:$0xf]
  %v33 = vld [vmem:[%s1 + $0x1c] sm:$0xf]
  %v34 = vld [vmem:[%s2] sm:$0x1]
  %v36 = vlaneseq
  %v37 = vshrl.u32 %v36, 7
  %v38 = vsub.s32 0, %v37
  %v39 = vrot.slane %v34, %v38
  %v43 = vunpack.c.l.b16 %v24
  %v44 = vunpack.c.l.b16 %v25
  %v45 = vpack.c.b16 %v44, %v43
  %v54 = vunpack.c.l.b16 %v26
  %v55 = vunpack.c.l.b16 %v27
  %v56 = vunpack.c.l.b16 %v28
  %v57 = vunpack.c.l.b16 %v29
  %v58 = vunpack.c.l.b16 %v30
  %v59 = vunpack.c.l.b16 %v31
  %v60 = vunpack.c.l.b16 %v32
  %v61 = vunpack.c.l.b16 %v33
  %v62 = vpack.c.b16 %v55, %v54
  %v63 = vpack.c.b16 %v57, %v56
  %v64 = vpack.c.b16 %v59, %v58
  %v65 = vpack.c.b16 %v61, %v60
  %vm70 = vcmask 523264
  %v72 = vsel %vm70, %v45, 0
  %74 = vmatprep.subr.bf16.mxu0 0
  %75 = vmatpush1.bf16.msra.mxu0 %v62
  %76 = vmatprep.subr.bf16.mxu0 0
  %77 = vmatpush1.bf16.msra.mxu0 %v63
  %78 = vmatprep.subr.bf16.mxu0 0
  %79 = vmatpush1.bf16.msra.mxu0 %v64
  %80 = vmatprep.subr.bf16.mxu0 0
  %81 = vmatpush1.bf16.msra.mxu0 %v65
  %82 = vmatprep.subr.bf16.mxu0 0
  %83 = vmatpush1.bf16.msra.mxu0 0
  %84 = vmatprep.subr.bf16.mxu0 0
  %85 = vmatpush1.bf16.msra.mxu0 0
  %86 = vmatprep.subr.bf16.mxu0 0
  %87 = vmatpush1.bf16.msra.mxu0 0
  %88 = vmatprep.subr.bf16.mxu0 0
  %89 = vmatpush1.bf16.msra.mxu0 0
  %90 = vmatprep.subr.bf16.mxu0 0
  %91 = vmatpush1.bf16.msra.mxu0 0
  %92 = vmatprep.subr.bf16.mxu0 0
  %93 = vmatpush1.bf16.msra.mxu0 0
  %94 = vmatprep.subr.bf16.mxu0 0
  %95 = vmatpush1.bf16.msra.mxu0 0
  %96 = vmatprep.subr.bf16.mxu0 0
  %97 = vmatpush1.bf16.msra.mxu0 0
  %98 = vmatprep.subr.bf16.mxu0 0
  %99 = vmatpush1.bf16.msra.mxu0 0
  %100 = vmatprep.subr.bf16.mxu0 0
  %101 = vmatpush1.bf16.msra.mxu0 0
  %102 = vmatprep.subr.bf16.mxu0 0
  %103 = vmatpush1.bf16.msra.mxu0 0
  %104 = vmatprep.subr.bf16.mxu0 0
  %105 = vmatpush1.bf16.msra.mxu0 0
  %106 = vmatprep.mubr.bf16.mxu0 0
  %107 = vmatmul.mubr.bf16.gmra.mrb[0].mxu0 %v72
  %v108 = vpop.f32.mrb[0].mxu0
  %v109 = vadd.f32 %v39, %v108
  %v110 = vpop.f32.mrb[0].mxu0
  %v111 = vpop.f32.mrb[0].mxu0
  %v112 = vadd.f32 %v39, %v111
  %v113 = vpop.f32.mrb[0].mxu0
  %114 = vdwg.mxu0
  %v115 = vld [vmem:[%s3] sm:$0xf]
  %v116 = vld [vmem:[%s3 + $0x4] sm:$0xf]
  %v117 = vunpack.c.l.bf16 %v115
  %v118 = vunpack.c.l.bf16 %v116
  %v119 = vadd.f32 %v109, %v117
  %v120 = vadd.f32 %v112, %v118
  %v121 = vld [vmem:[%s4] sm:$0x1]
  %v122 = vld [vmem:[%s5] sm:$0x1]
  %vm123 = vcmask 261120
  %v124 = vsel %vm123, %v119, 0.0
  %125 = vadd.xlane.f32.xlu0 %v124
  %v126 = vpop.xlane.xlu0 %125
  %v127 = vsel %vm123, %v120, 0.0
  %128 = vadd.xlane.f32.xlu0 %v127
  %v129 = vpop.xlane.xlu0 %128
  %v130 = vrcp.pop 32.0
  %v131 = vmul.f32 %v126, %v130
  %v132 = vmul.f32 %v129, %v130
  %v133 = vsub.f32 %v119, %v131
  %v134 = vsub.f32 %v120, %v132
  %v135 = vmul.f32 %v133, %v133
  %v136 = vmul.f32 %v134, %v134
  %v137 = vsel %vm123, %v135, 0.0
  %138 = vadd.xlane.f32.xlu0 %v137
  %v139 = vpop.xlane.xlu0 %138
  %v140 = vsel %vm123, %v136, 0.0
  %141 = vadd.xlane.f32.xlu0 %v140
  %v142 = vpop.xlane.xlu0 %141
  %v143 = vmul.f32 %v139, %v130
  %v144 = vmul.f32 %v142, %v130
  %v145 = vadd.f32 %v143, 1e-12
  %v146 = vadd.f32 %v144, 1e-12
  %v147 = vrsqrt.pop %v145
  %v148 = vrsqrt.pop %v146
  %v149 = vmul.f32 %v133, %v147
  %v150 = vmul.f32 %v134, %v148
  %v152 = vlaneseq
  %v153 = vshrl.u32 %v152, 7
  %v154 = vsub.s32 0, %v153
  %v155 = vrot.slane %v121, %v154
  %v157 = vmul.f32 %v149, %v155
  %v158 = vmul.f32 %v150, %v155
  %v160 = vlaneseq
  %v161 = vshrl.u32 %v160, 7
  %v162 = vsub.s32 0, %v161
  %v163 = vrot.slane %v122, %v162
  %v165 = vadd.f32 %v157, %v163
  %v166 = vadd.f32 %v158, %v163
  %v167 = vpack.c.bf16 %v166, %v165
  %v169 = vunpack.c.l.b16 %v167
  %v170 = vunpack.c.h.b16 %v167
  %v171 = vpack.c.b16 %v169, %v169
  %v172 = vpack.c.b16 %v170, %v170
  %vm175 = vcmask 257024
  %176 = vst.msk [vmem:[%s6] sm:$0xf] %vm175, %v171
  %177 = vst.msk [vmem:[%s6 + $0x4] sm:$0xf] %vm175, %v172
  // Predicated region
  $region26: #{fwd.16} parent=0 // pred_check
    _
  $region27: #{fwd.16} parent=0 // pred_check_branch
    %179 = sbr.rel (0) target = $region29
  $region28: #{fwd.16} parent=0 // pred_region
    _
  $region29: #{fwd.16} parent=0 // pred_fallthru
    _
  // Predicated region
  $region30: #{fwd.16} parent=0 // pred_check
    _
  $region31: #{fwd.16} parent=0 // pred_check_branch
    %181 = sbr.rel (0) target = $region33
  $region32: #{fwd.16} parent=0 // pred_region
    _
  $region33: #{fwd.16} parent=0 // pred_fallthru
    _

</llo_original>
